<compile_context>
chip_gen: v6e
topology: v6e:2x2x1
jax: 0.10.0
libtpu: 0.0.40
codegen_flags: <defaults>
</compile_context>

<pallas_src>
import math
import numpy as np
import jax
import jax.numpy as jnp
from jax.experimental import pallas as pl
from jax.experimental.pallas import tpu as pltpu


def _cdiv(a, b):
    return -(-a // b)


def _round_up(a, b):
    return _cdiv(a, b) * b


def _make_tables(input_dim, n_frequencies, input_min, input_max, rows_per_pack):
    """Exact 0/1 selection matrix W plus per-output-column scale / bias rows.

    With R input rows packed per super-row and x split into 3 bf16 terms stacked along
    the contraction dim:  angle = (x_packed3 @ W) * scale_row + bias_row ; out = sin(angle)
    reproduces the scaled tcnn Frequency encoding for all R rows at once.
    """
    D, F, R = input_dim, n_frequencies, rows_per_pack
    out_dim = D * 2 * F
    inv_range = 1.0 / max(float(input_max) - float(input_min), 1e-9)
    imin = float(input_min)

    j = np.arange(out_dim)
    d = j // (2 * F)                               # which input dim feeds column j
    f = (j % (2 * F)) // 2                         # frequency index
    is_cos = (j % 2).astype(np.float64)            # odd columns: cos = sin(. + pi/2)
    freq = np.pi * (2.0 ** f)                      # (out_dim,)

    sel = (d[None, :] == np.arange(D)[:, None]).astype(np.float32)   # (D, out_dim) 0/1
    # Block-diagonal over the R packed rows; replicated for the hi/mid/lo split terms so
    # one bf16 matmul (f32 accumulate) sums them back to x exactly (W entries are 0/1).
    W = np.zeros((R * 3 * D, R * out_dim), dtype=np.float32)
    for r in range(R):
        for t in range(3):
            row0 = (r * 3 + t) * D
            W[row0:row0 + D, r * out_dim:(r + 1) * out_dim] = sel

    scale = freq * inv_range                                   # folded scale + frequency
    bias = is_cos * (0.5 * np.pi) - imin * inv_range * freq    # folded phase + input_min
    scale_row = np.tile(scale, R)[None, :]
    bias_row = np.tile(bias, R)[None, :]
    return (jnp.asarray(W, jnp.bfloat16),          # exact in bf16 (0/1 entries)
            jnp.asarray(scale_row, jnp.float32),
            jnp.asarray(bias_row, jnp.float32))


def _split3_bf16(x):
    """Exact 3-term bf16 decomposition of an f32 array (3 x 8 mantissa bits >= 24)."""
    hi = x.astype(jnp.bfloat16)
    r1 = x - hi.astype(jnp.float32)
    mid = r1.astype(jnp.bfloat16)
    lo = (r1 - mid.astype(jnp.float32)).astype(jnp.bfloat16)
    return hi, mid, lo


def _kernel(x_ref, w_ref, scale_ref, bias_ref, o_ref):
    # One DEFAULT-precision bf16 MXU matmul (pure one-hot selection; numerically exact),
    # then a row-broadcast multiply-add (scale/frequency + phase) on the VPU and EUP sin.
    sel = jnp.dot(x_ref[...], w_ref[...], preferred_element_type=jnp.float32)
    ang = sel * scale_ref[...] + bias_ref[...]
    o_ref[...] = jnp.sin(ang).astype(o_ref.dtype)


def scaled_tcnn_frequency_encoding(x, *, input_min, input_max, n_frequencies=8,
                                   tile_super_rows=1024, out_dtype=jnp.bfloat16):
    """ScaledTCNN.forward for a Frequency-encoding config; hot path in Pallas."""
    N, D = x.shape
    F = int(n_frequencies)
    out_dim = D * 2 * F

    # Pack R rows per super-row so the output last dim R*out_dim is a multiple of 256
    # (v6e/v7x MXU width; also a multiple of 128 -> exact tiling on v5e, unmasked vst).
    R = 256 // math.gcd(out_dim, 256)
    packed_in = 3 * R * D            # hi/mid/lo split terms stacked along the K dim
    packed_out = R * out_dim

    W, scale_row, bias_row = _make_tables(D, F, input_min, input_max, R)

    # Keep double-buffered tiles (+ resident W) well inside the scoped VMEM budget.
    out_bytes = jnp.dtype(out_dtype).itemsize
    per_super = 2 * (packed_out * out_bytes + packed_in * 2)
    budget = 24 * 1024 * 1024 - 2 * (packed_in * packed_out * 2)
    max_tile = max(16, (max(budget, 0) // max(per_super, 1)) // 16 * 16)
    tile_cap = max(16, min(int(tile_super_rows), max_tile))

    # Grid: last tile nearly full (bounded padding); even step count when >1 so v7x's
    # two TensorCores split the batch evenly; no forced split on 1-TC chips (v5e/v6e).
    ns_raw = _cdiv(N, R)
    n_steps = _cdiv(ns_raw, tile_cap)
    if n_steps > 1 and n_steps % 2:
        n_steps += 1
    tile = _round_up(_cdiv(ns_raw, n_steps), 16)
    ns = n_steps * tile
    n_padded = ns * R

    xp = jnp.pad(x, ((0, n_padded - N), (0, 0))) if n_padded != N else x
    hi, mid, lo = _split3_bf16(xp)
    # (n_padded, 3, D) -> (ns, R*3*D): per super-row layout is [row r][term t][dim d],
    # matching the block-diagonal rows of W.
    xpk = jnp.stack([hi, mid, lo], axis=1).reshape(ns, packed_in)

    out = pl.pallas_call(
        _kernel,
        out_shape=jax.ShapeDtypeStruct((ns, packed_out), out_dtype),
        grid_spec=pltpu.PrefetchScalarGridSpec(
            num_scalar_prefetch=0,
            grid=(n_steps,),
            in_specs=[
                pl.BlockSpec((tile, packed_in), lambda i: (i, 0)),         # packed x tile
                pl.BlockSpec((packed_in, packed_out), lambda i: (0, 0)),   # resident W
                pl.BlockSpec((1, packed_out), lambda i: (0, 0)),           # scale row
                pl.BlockSpec((1, packed_out), lambda i: (0, 0)),           # bias row
            ],
            out_specs=pl.BlockSpec((tile, packed_out), lambda i: (i, 0)),
        ),
        compiler_params=pltpu.CompilerParams(
            dimension_semantics=("parallel",),
            vmem_limit_bytes=32 * 1024 * 1024,
        ),
    )(xpk, W, scale_row, bias_row)

    # Unpack super-rows back to (N, out_dim); reshape is contiguous/free.
    return out.reshape(n_padded, out_dim)[:N]


if __name__ == "__main__":
    key = jax.random.PRNGKey(0)
    N, D, F = 256, 3, 8
    input_min, input_max = -1.0, 1.0

    x = jax.random.uniform(key, (N, D), dtype=jnp.float32,
                           minval=input_min, maxval=input_max)

    # float64 reference of the same forward semantics (tcnn Frequency layout).
    x64 = np.asarray(x).astype(np.float64)
    xs = (x64 - input_min) / max(input_max - input_min, 1e-9)
    freqs = np.pi * (2.0 ** np.arange(F))
    ang = xs[:, :, None] * freqs[None, None, :]                       # (N, D, F)
    ref = np.stack([np.sin(ang), np.cos(ang)], axis=-1).reshape(N, D * 2 * F)

    # Tight check with f32 output: validates the exact one-hot + 3-term bf16 split path
    # (angle error budget ~6e-5 at |angle| <= pi*2^(F-1) ~ 4e2).
    out_f32 = jax.block_until_ready(scaled_tcnn_frequency_encoding(
        x, input_min=input_min, input_max=input_max, n_frequencies=F,
        out_dtype=jnp.float32))
    np.testing.assert_allclose(np.asarray(out_f32), ref, atol=5e-4, rtol=1e-3)

    # Default path (bf16 output): tolerance dominated by bf16 quantization of sin in [-1,1].
    out_bf16 = jax.block_until_ready(scaled_tcnn_frequency_encoding(
        x, input_min=input_min, input_max=input_max, n_frequencies=F))
    np.testing.assert_allclose(np.asarray(out_bf16.astype(jnp.float32)), ref,
                               atol=5e-3, rtol=1e-2)

    print("KERNEL_OK")
</pallas_src>

<mosaic_0001>
module attributes {stable_mosaic.version = 11 : i64} {
  func.func @_kernel(%arg0: i32, %arg1: memref<16x144xbf16, #tpu.memory_space<vmem>>, %arg2: memref<144x768xbf16, #tpu.memory_space<vmem>>, %arg3: memref<1x768xf32, #tpu.memory_space<vmem>>, %arg4: memref<1x768xf32, #tpu.memory_space<vmem>>, %arg5: memref<16x768xf32, #tpu.memory_space<vmem>>) attributes {dimension_semantics = [#tpu.dimension_semantics<parallel>], iteration_bounds = array<i64: 1>, scalar_prefetch = 0 : i64, scratch_operands = 0 : i64, tpu.core_type = #tpu.core_type<tc>, window_params = [{transform_indices = @transform_0, window_bounds = array<i64: 16, 144>}, {pipeline_mode = #tpu.pipeline_mode<synchronous>, transform_indices = @transform_1, window_bounds = array<i64: 144, 768>}, {pipeline_mode = #tpu.pipeline_mode<synchronous>, transform_indices = @transform_2, window_bounds = array<i64: 1, 768>}, {pipeline_mode = #tpu.pipeline_mode<synchronous>, transform_indices = @transform_3, window_bounds = array<i64: 1, 768>}, {transform_indices = @transform_4, window_bounds = array<i64: 16, 768>}]} {
    %c0 = arith.constant 0 : index
    %c0_0 = arith.constant 0 : index
    %0 = vector.load %arg1[%c0, %c0_0] : memref<16x144xbf16, #tpu.memory_space<vmem>>, vector<16x144xbf16>
    %c0_1 = arith.constant 0 : index
    %c0_2 = arith.constant 0 : index
    %1 = vector.load %arg2[%c0_1, %c0_2] : memref<144x768xbf16, #tpu.memory_space<vmem>>, vector<144x768xbf16>
    %cst = arith.constant dense<0.000000e+00> : vector<16x768xf32>
    %2 = tpu.matmul %0, %1, %cst {dimension_numbers = #tpu.dot_dimension_numbers<[1], [0], [0], [1], [0, 0, 1, 1], [], []>} : vector<16x144xbf16>, vector<144x768xbf16>, vector<16x768xf32> -> vector<16x768xf32>
    %c0_3 = arith.constant 0 : index
    %c0_4 = arith.constant 0 : index
    %3 = vector.load %arg3[%c0_3, %c0_4] : memref<1x768xf32, #tpu.memory_space<vmem>>, vector<1x768xf32>
    %4 = vector.broadcast %3 : vector<1x768xf32> to vector<16x768xf32>
    %5 = arith.mulf %2, %4 : vector<16x768xf32>
    %c0_5 = arith.constant 0 : index
    %c0_6 = arith.constant 0 : index
    %6 = vector.load %arg4[%c0_5, %c0_6] : memref<1x768xf32, #tpu.memory_space<vmem>>, vector<1x768xf32>
    %7 = vector.broadcast %6 : vector<1x768xf32> to vector<16x768xf32>
    %8 = arith.addf %5, %7 : vector<16x768xf32>
    %9 = math.sin %8 : vector<16x768xf32>
    %c0_7 = arith.constant 0 : index
    %c0_8 = arith.constant 0 : index
    %10 = vector.load %arg5[%c0_7, %c0_8] : memref<16x768xf32, #tpu.memory_space<vmem>>, vector<16x768xf32>
    tpu.vector_store %arg5[%c0_7, %c0_8], %9 {strides = array<i32>} : memref<16x768xf32, #tpu.memory_space<vmem>>, vector<16x768xf32>,
    return
  }
  func.func @transform_0(%arg0: i32) -> (i32, i32) {
    %c0_i32 = arith.constant 0 : i32
    %c0_i32_0 = arith.constant 0 : i32
    return %arg0, %c0_i32 : i32, i32
  }
  func.func @transform_1(%arg0: i32) -> (i32, i32) {
    %c0_i32 = arith.constant 0 : i32
    %c0_i32_0 = arith.constant 0 : i32
    %c0_i32_1 = arith.constant 0 : i32
    return %c0_i32, %c0_i32_0 : i32, i32
  }
  func.func @transform_2(%arg0: i32) -> (i32, i32) {
    %c0_i32 = arith.constant 0 : i32
    %c0_i32_0 = arith.constant 0 : i32
    %c0_i32_1 = arith.constant 0 : i32
    return %c0_i32, %c0_i32_0 : i32, i32
  }
  func.func @transform_3(%arg0: i32) -> (i32, i32) {
    %c0_i32 = arith.constant 0 : i32
    %c0_i32_0 = arith.constant 0 : i32
    %c0_i32_1 = arith.constant 0 : i32
    return %c0_i32, %c0_i32_0 : i32, i32
  }
  func.func @transform_4(%arg0: i32) -> (i32, i32) {
    %c0_i32 = arith.constant 0 : i32
    %c0_i32_0 = arith.constant 0 : i32
    return %arg0, %c0_i32 : i32, i32
  }
}

</mosaic_0001>

<llo_original>
// kernel: tpu_custom_call.1
$region0: #{tpu_custom_call.1}
  #allocation0 [shape = 'u32[]', space=smem, size = 0x4, offset = 0x4, fixed_abs, tag = 'smem constant byte address 0x4 - core index']
  #allocation1 [shape = 'u32[144,128]{1,0:T(1,128)}', space=vmem, size = 0x12000, scoped, tag = 'internal scratch']
  %s0 = inlined_call_operand.hbm [shape: bf16[16,144], index: 0, kind: input, shape index: {}]
  %s1 = inlined_call_operand.hbm [shape: bf16[144,768], index: 1, kind: input, shape index: {}]
  %s2 = inlined_call_operand.hbm [shape: f32[1,768], index: 2, kind: input, shape index: {}]
  %s3 = inlined_call_operand.hbm [shape: f32[1,768], index: 3, kind: input, shape index: {}]
  %s4 = inlined_call_operand.hbm [shape: f32[16,768], index: 4, kind: output, shape index: {}]
  %s5 = sld [smem:[#allocation0]]
  $region42: #{tpu_custom_call.1} parent=0
    _
  %s7 = ssub.s32 1, %s5
  %s8 = scalar_select 0, %s7, %s5
  $region1: #{tpu_custom_call.1} parent=0
    #allocation2 [shape = 'u8[8192]{0}', space=vmem, size = 0x2000, scoped, tag = 'input window, operand 0, single buffered']
    #allocation3 [shape = 's32[1]{0}', space=sflag, size = 0x4, scoped, tag = 'scoped memory for tpu_custom_call.1']
    #allocation4 [shape = 's32[1]{0}', space=sflag, size = 0x4, scoped, tag = 'scoped memory for tpu_custom_call.1']
    #allocation5 [shape = 'u8[221184]{0}', space=vmem, size = 0x36000, scoped, tag = 'input window, operand 1, single buffered']
    #allocation6 [shape = 's32[1]{0}', space=sflag, size = 0x4, scoped, tag = 'scoped memory for tpu_custom_call.1']
    #allocation7 [shape = 'u8[3072]{0}', space=vmem, size = 0xc00, scoped, tag = 'input window, operand 2, single buffered']
    #allocation8 [shape = 'u8[3072]{0}', space=vmem, size = 0xc00, scoped, tag = 'input window, operand 3, single buffered']
    #allocation9 [shape = 's32[1]{0}', space=sflag, size = 0x4, scoped, tag = 'scoped memory for tpu_custom_call.1']
    #allocation10 [shape = 'u8[49152]{0}', space=vmem, size = 0xc000, scoped, tag = 'output window, operand 0, single buffered']
    %9 = vsyncpa [#allocation3], 0
    %10 = vsyncpa [#allocation6], 0
    %11 = vsyncpa [#allocation9], 0
    %12 = vsyncpa [#allocation4], 0
    // Predicated region
    $region2: #{tpu_custom_call.1} parent=1 // pred_check
      _
    $region3: #{tpu_custom_call.1} parent=1 // pred_check_branch
      %14 = sbr.rel (0) target = $region5
    $region4: #{tpu_custom_call.1} parent=1 // pred_region
      %s16 = ssub.s32 256, 256
      %17 = vsyncadd [#allocation3], %s16
      %s18 = sshll.u32 [#allocation2], 4
      %s19 = int_to_ptr.vmem [resolvable:$true] %s18
      %24 = dma.hbm_to_vmem [thread:$0]  %s0, 256, %s19, [#allocation3], 128, 128, 8
    $region5: #{tpu_custom_call.1} parent=1 // pred_fallthru
      _
    // Predicated region
    $region6: #{tpu_custom_call.1} parent=1 // pred_check
      _
    $region7: #{tpu_custom_call.1} parent=1 // pred_check_branch
      %26 = sbr.rel (0) target = $region9
    $region8: #{tpu_custom_call.1} parent=1 // pred_region
      %s28 = ssub.s32 6912, 6912
      %29 = vsyncadd [#allocation6], %s28
      %s30 = sshll.u32 [#allocation5], 4
      %s31 = int_to_ptr.vmem [resolvable:$true] %s30
      %36 = dma.hbm_to_vmem [thread:$0]  %s1, 6912, %s31, [#allocation6], 384, 384, 24
    $region9: #{tpu_custom_call.1} parent=1 // pred_fallthru
      _
    // Predicated region
    $region10: #{tpu_custom_call.1} parent=1 // pred_check
      _
    $region11: #{tpu_custom_call.1} parent=1 // pred_check_branch
      %38 = sbr.rel (0) target = $region13
    $region12: #{tpu_custom_call.1} parent=1 // pred_region
      %s40 = ssub.s32 96, 96
      %41 = vsyncadd [#allocation6], %s40
      %s43 = sshll.u32 [#allocation7], 4
      %s44 = int_to_ptr.vmem [resolvable:$true] %s43
      %46 = dma.hbm_to_vmem [thread:$0]  %s2, 96, %s44, [#allocation6]
    $region13: #{tpu_custom_call.1} parent=1 // pred_fallthru
      _
    // Predicated region
    $region14: #{tpu_custom_call.1} parent=1 // pred_check
      _
    $region15: #{tpu_custom_call.1} parent=1 // pred_check_branch
      %48 = sbr.rel (0) target = $region17
    $region16: #{tpu_custom_call.1} parent=1 // pred_region
      %s50 = ssub.s32 96, 96
      %51 = vsyncadd [#allocation9], %s50
      %s53 = sshll.u32 [#allocation8], 4
      %s54 = int_to_ptr.vmem [resolvable:$true] %s53
      %56 = dma.hbm_to_vmem [thread:$0]  %s3, 96, %s54, [#allocation9]
    $region17: #{tpu_custom_call.1} parent=1 // pred_fallthru
      _
    // Predicated region
    $region18: #{tpu_custom_call.1} parent=1 // pred_check
      _
    $region19: #{tpu_custom_call.1} parent=1 // pred_check_branch
      %58 = sbr.rel (0) target = $region21
    $region20: #{tpu_custom_call.1} parent=1 // pred_region
      %59 = dma.done [#allocation3], 256
    $region21: #{tpu_custom_call.1} parent=1 // pred_fallthru
      _
    // Predicated region
    $region22: #{tpu_custom_call.1} parent=1 // pred_check
      _
    $region23: #{tpu_custom_call.1} parent=1 // pred_check_branch
      %61 = sbr.rel (0) target = $region25
    $region24: #{tpu_custom_call.1} parent=1 // pred_region
      %62 = dma.done [#allocation6], 6912
    $region25: #{tpu_custom_call.1} parent=1 // pred_fallthru
      _
    // Predicated region
    $region26: #{tpu_custom_call.1} parent=1 // pred_check
      _
    $region27: #{tpu_custom_call.1} parent=1 // pred_check_branch
      %64 = sbr.rel (0) target = $region29
    $region28: #{tpu_custom_call.1} parent=1 // pred_region
      %65 = dma.done [#allocation6], 96
    $region29: #{tpu_custom_call.1} parent=1 // pred_fallthru
      _
    // Predicated region
    $region30: #{tpu_custom_call.1} parent=1 // pred_check
      _
    $region31: #{tpu_custom_call.1} parent=1 // pred_check_branch
      %67 = sbr.rel (0) target = $region33
    $region32: #{tpu_custom_call.1} parent=1 // pred_region
      %68 = dma.done [#allocation9], 96
    $region33: #{tpu_custom_call.1} parent=1 // pred_fallthru
      _
    %v70 = vld [vmem:[#allocation2] sm:$0xff]
    %v71 = vld [vmem:[#allocation2 + $0x8] sm:$0xff]
    %v72 = vld [vmem:[#allocation5] sm:$0xff]
    %v73 = vld [vmem:[#allocation5 + $0x8] sm:$0xff]
    %v74 = vld [vmem:[#allocation5 + $0x10] sm:$0xff]
    %v75 = vld [vmem:[#allocation5 + $0x18] sm:$0xff]
    %v76 = vld [vmem:[#allocation5 + $0x20] sm:$0xff]
    %v77 = vld [vmem:[#allocation5 + $0x28] sm:$0xff]
    %v78 = vld [vmem:[#allocation5 + $0x30] sm:$0xff]
    %v79 = vld [vmem:[#allocation5 + $0x38] sm:$0xff]
    %v80 = vld [vmem:[#allocation5 + $0x40] sm:$0xff]
    %v81 = vld [vmem:[#allocation5 + $0x48] sm:$0xff]
    %v82 = vld [vmem:[#allocation5 + $0x50] sm:$0xff]
    %v83 = vld [vmem:[#allocation5 + $0x58] sm:$0xff]
    %v84 = vld [vmem:[#allocation5 + $0x60] sm:$0xff]
    %v85 = vld [vmem:[#allocation5 + $0x68] sm:$0xff]
    %v86 = vld [vmem:[#allocation5 + $0x70] sm:$0xff]
    %v87 = vld [vmem:[#allocation5 + $0x78] sm:$0xff]
    %v88 = vld [vmem:[#allocation5 + $0x80] sm:$0xff]
    %v89 = vld [vmem:[#allocation5 + $0x88] sm:$0xff]
    %v90 = vld [vmem:[#allocation5 + $0x90] sm:$0xff]
    %v91 = vld [vmem:[#allocation5 + $0x98] sm:$0xff]
    %v92 = vld [vmem:[#allocation5 + $0xa0] sm:$0xff]
    %v93 = vld [vmem:[#allocation5 + $0xa8] sm:$0xff]
    %v94 = vld [vmem:[#allocation5 + $0xb0] sm:$0xff]
    %v95 = vld [vmem:[#allocation5 + $0xb8] sm:$0xff]
    %v96 = vld [vmem:[#allocation5 + $0xc0] sm:$0xff]
    %v97 = vld [vmem:[#allocation5 + $0xc8] sm:$0xff]
    %v98 = vld [vmem:[#allocation5 + $0xd0] sm:$0xff]
    %v99 = vld [vmem:[#allocation5 + $0xd8] sm:$0xff]
    %v100 = vld [vmem:[#allocation5 + $0xe0] sm:$0xff]
    %v101 = vld [vmem:[#allocation5 + $0xe8] sm:$0xff]
    %v102 = vld [vmem:[#allocation5 + $0xf0] sm:$0xff]
    %v103 = vld [vmem:[#allocation5 + $0xf8] sm:$0xff]
    %v104 = vld [vmem:[#allocation5 + $0x100] sm:$0xff]
    %v105 = vld [vmem:[#allocation5 + $0x108] sm:$0xff]
    %v106 = vld [vmem:[#allocation5 + $0x110] sm:$0xff]
    %v107 = vld [vmem:[#allocation5 + $0x118] sm:$0xff]
    %v108 = vld [vmem:[#allocation5 + $0x120] sm:$0xff]
    %v109 = vld [vmem:[#allocation5 + $0x128] sm:$0xff]
    %v110 = vld [vmem:[#allocation5 + $0x130] sm:$0xff]
    %v111 = vld [vmem:[#allocation5 + $0x138] sm:$0xff]
    %v112 = vld [vmem:[#allocation5 + $0x140] sm:$0xff]
    %v113 = vld [vmem:[#allocation5 + $0x148] sm:$0xff]
    %v114 = vld [vmem:[#allocation5 + $0x150] sm:$0xff]
    %v115 = vld [vmem:[#allocation5 + $0x158] sm:$0xff]
    %v116 = vld [vmem:[#allocation5 + $0x160] sm:$0xff]
    %v117 = vld [vmem:[#allocation5 + $0x168] sm:$0xff]
    %v118 = vld [vmem:[#allocation5 + $0x170] sm:$0xff]
    %v119 = vld [vmem:[#allocation5 + $0x178] sm:$0xff]
    %v120 = vld [vmem:[#allocation5 + $0x180] sm:$0xff]
    %v121 = vld [vmem:[#allocation5 + $0x188] sm:$0xff]
    %v122 = vld [vmem:[#allocation5 + $0x190] sm:$0xff]
    %v123 = vld [vmem:[#allocation5 + $0x198] sm:$0xff]
    %v124 = vld [vmem:[#allocation5 + $0x1a0] sm:$0xff]
    %v125 = vld [vmem:[#allocation5 + $0x1a8] sm:$0xff]
    %v128 = vunpack.c.l.b16 %v70
    %v129 = vunpack.c.h.b16 %v70
    %v130 = vunpack.c.l.b16 %v71
    %v131 = vunpack.c.h.b16 %v71
    %v132 = vpack.c.b16 %v130, %v128
    %v133 = vpack.c.b16 %v131, %v129
    %v189 = vunpack.c.l.b16 %v72
    %v190 = vunpack.c.h.b16 %v72
    %v191 = vunpack.c.l.b16 %v73
    %v192 = vunpack.c.h.b16 %v73
    %v193 = vunpack.c.l.b16 %v74
    %v194 = vunpack.c.h.b16 %v74
    %v195 = vunpack.c.l.b16 %v75
    %v196 = vunpack.c.h.b16 %v75
    %v197 = vunpack.c.l.b16 %v76
    %v198 = vunpack.c.h.b16 %v76
    %v199 = vunpack.c.l.b16 %v77
    %v200 = vunpack.c.h.b16 %v77
    %v201 = vunpack.c.l.b16 %v78
    %v202 = vunpack.c.h.b16 %v78
    %v203 = vunpack.c.l.b16 %v79
    %v204 = vunpack.c.h.b16 %v79
    %v205 = vunpack.c.l.b16 %v80
    %v206 = vunpack.c.h.b16 %v80
    %v207 = vunpack.c.l.b16 %v81
    %v208 = vunpack.c.h.b16 %v81
    %v209 = vunpack.c.l.b16 %v82
    %v210 = vunpack.c.h.b16 %v82
    %v211 = vunpack.c.l.b16 %v83
    %v212 = vunpack.c.h.b16 %v83
    %v213 = vunpack.c.l.b16 %v84
    %v214 = vunpack.c.h.b16 %v84
    %v215 = vunpack.c.l.b16 %v85
    %v216 = vunpack.c.h.b16 %v85
    %v217 = vunpack.c.l.b16 %v86
    %v218 = vunpack.c.h.b16 %v86
    %v219 = vunpack.c.l.b16 %v87
    %v220 = vunpack.c.h.b16 %v87
    %v221 = vunpack.c.l.b16 %v88
    %v222 = vunpack.c.h.b16 %v88
    %v223 = vunpack.c.l.b16 %v89
    %v224 = vunpack.c.h.b16 %v89
    %v225 = vunpack.c.l.b16 %v90
    %v226 = vunpack.c.h.b16 %v90
    %v227 = vunpack.c.l.b16 %v91
    %v228 = vunpack.c.h.b16 %v91
    %v229 = vunpack.c.l.b16 %v92
    %v230 = vunpack.c.h.b16 %v92
    %v231 = vunpack.c.l.b16 %v93
    %v232 = vunpack.c.h.b16 %v93
    %v233 = vunpack.c.l.b16 %v94
    %v234 = vunpack.c.h.b16 %v94
    %v235 = vunpack.c.l.b16 %v95
    %v236 = vunpack.c.h.b16 %v95
    %v237 = vunpack.c.l.b16 %v96
    %v238 = vunpack.c.h.b16 %v96
    %v239 = vunpack.c.l.b16 %v97
    %v240 = vunpack.c.h.b16 %v97
    %v241 = vunpack.c.l.b16 %v98
    %v242 = vunpack.c.h.b16 %v98
    %v243 = vunpack.c.l.b16 %v99
    %v244 = vunpack.c.h.b16 %v99
    %v245 = vunpack.c.l.b16 %v100
    %v246 = vunpack.c.h.b16 %v100
    %v247 = vunpack.c.l.b16 %v101
    %v248 = vunpack.c.h.b16 %v101
    %v249 = vunpack.c.l.b16 %v102
    %v250 = vunpack.c.h.b16 %v102
    %v251 = vunpack.c.l.b16 %v103
    %v252 = vunpack.c.h.b16 %v103
    %v253 = vunpack.c.l.b16 %v104
    %v254 = vunpack.c.h.b16 %v104
    %v255 = vunpack.c.l.b16 %v105
    %v256 = vunpack.c.h.b16 %v105
    %v257 = vunpack.c.l.b16 %v106
    %v258 = vunpack.c.h.b16 %v106
    %v259 = vunpack.c.l.b16 %v107
    %v260 = vunpack.c.h.b16 %v107
    %v261 = vunpack.c.l.b16 %v108
    %v262 = vunpack.c.h.b16 %v108
    %v263 = vunpack.c.l.b16 %v109
    %v264 = vunpack.c.h.b16 %v109
    %v265 = vunpack.c.l.b16 %v110
    %v266 = vunpack.c.h.b16 %v110
    %v267 = vunpack.c.l.b16 %v111
    %v268 = vunpack.c.h.b16 %v111
    %v269 = vunpack.c.l.b16 %v112
    %v270 = vunpack.c.h.b16 %v112
    %v271 = vunpack.c.l.b16 %v113
    %v272 = vunpack.c.h.b16 %v113
    %v273 = vunpack.c.l.b16 %v114
    %v274 = vunpack.c.h.b16 %v114
    %v275 = vunpack.c.l.b16 %v115
    %v276 = vunpack.c.h.b16 %v115
    %v277 = vunpack.c.l.b16 %v116
    %v278 = vunpack.c.h.b16 %v116
    %v279 = vunpack.c.l.b16 %v117
    %v280 = vunpack.c.h.b16 %v117
    %v281 = vunpack.c.l.b16 %v118
    %v282 = vunpack.c.h.b16 %v118
    %v283 = vunpack.c.l.b16 %v119
    %v284 = vunpack.c.h.b16 %v119
    %v285 = vunpack.c.l.b16 %v120
    %v286 = vunpack.c.h.b16 %v120
    %v287 = vunpack.c.l.b16 %v121
    %v288 = vunpack.c.h.b16 %v121
    %v289 = vunpack.c.l.b16 %v122
    %v290 = vunpack.c.h.b16 %v122
    %v291 = vunpack.c.l.b16 %v123
    %v292 = vunpack.c.h.b16 %v123
    %v293 = vunpack.c.l.b16 %v124
    %v294 = vunpack.c.h.b16 %v124
    %v295 = vunpack.c.l.b16 %v125
    %v296 = vunpack.c.h.b16 %v125
    %v297 = vpack.c.b16 %v195, %v189
    %v298 = vpack.c.b16 %v196, %v190
    %v299 = vpack.c.b16 %v197, %v191
    %v300 = vpack.c.b16 %v198, %v192
    %v301 = vpack.c.b16 %v199, %v193
    %v302 = vpack.c.b16 %v200, %v194
    %v303 = vpack.c.b16 %v207, %v201
    %v304 = vpack.c.b16 %v208, %v202
    %v305 = vpack.c.b16 %v209, %v203
    %v306 = vpack.c.b16 %v210, %v204
    %v307 = vpack.c.b16 %v211, %v205
    %v308 = vpack.c.b16 %v212, %v206
    %v309 = vpack.c.b16 %v219, %v213
    %v310 = vpack.c.b16 %v220, %v214
    %v311 = vpack.c.b16 %v221, %v215
    %v312 = vpack.c.b16 %v222, %v216
    %v313 = vpack.c.b16 %v223, %v217
    %v314 = vpack.c.b16 %v224, %v218
    %v315 = vpack.c.b16 %v231, %v225
    %v316 = vpack.c.b16 %v232, %v226
    %v317 = vpack.c.b16 %v233, %v227
    %v318 = vpack.c.b16 %v234, %v228
    %v319 = vpack.c.b16 %v235, %v229
    %v320 = vpack.c.b16 %v236, %v230
    %v321 = vpack.c.b16 %v243, %v237
    %v322 = vpack.c.b16 %v244, %v238
    %v323 = vpack.c.b16 %v245, %v239
    %v324 = vpack.c.b16 %v246, %v240
    %v325 = vpack.c.b16 %v247, %v241
    %v326 = vpack.c.b16 %v248, %v242
    %v327 = vpack.c.b16 %v255, %v249
    %v328 = vpack.c.b16 %v256, %v250
    %v329 = vpack.c.b16 %v257, %v251
    %v330 = vpack.c.b16 %v258, %v252
    %v331 = vpack.c.b16 %v259, %v253
    %v332 = vpack.c.b16 %v260, %v254
    %v333 = vpack.c.b16 %v267, %v261
    %v334 = vpack.c.b16 %v268, %v262
    %v335 = vpack.c.b16 %v269, %v263
    %v336 = vpack.c.b16 %v270, %v264
    %v337 = vpack.c.b16 %v271, %v265
    %v338 = vpack.c.b16 %v272, %v266
    %v339 = vpack.c.b16 %v279, %v273
    %v340 = vpack.c.b16 %v280, %v274
    %v341 = vpack.c.b16 %v281, %v275
    %v342 = vpack.c.b16 %v282, %v276
    %v343 = vpack.c.b16 %v283, %v277
    %v344 = vpack.c.b16 %v284, %v278
    %v345 = vpack.c.b16 %v291, %v285
    %v346 = vpack.c.b16 %v292, %v286
    %v347 = vpack.c.b16 %v293, %v287
    %v348 = vpack.c.b16 %v294, %v288
    %v349 = vpack.c.b16 %v295, %v289
    %v350 = vpack.c.b16 %v296, %v290
    %vm405 = vcmask 130048
    %v407 = vsel %vm405, %v133, 0
    %409 = vmatprep.subr.bf16.mxu0 %v340
    %410 = vmatpush1.bf16.msra.mxu0 %v339
    %411 = vmatprep.subr.bf16.mxu0 %v334
    %412 = vmatpush1.bf16.msra.mxu0 %v333
    %413 = vmatprep.subr.bf16.mxu0 %v328
    %414 = vmatpush1.bf16.msra.mxu0 %v327
    %415 = vmatprep.subr.bf16.mxu0 %v322
    %416 = vmatpush1.bf16.msra.mxu0 %v321
    %417 = vmatprep.subr.bf16.mxu0 %v316
    %418 = vmatpush1.bf16.msra.mxu0 %v315
    %419 = vmatprep.subr.bf16.mxu0 %v310
    %420 = vmatpush1.bf16.msra.mxu0 %v309
    %421 = vmatprep.subr.bf16.mxu0 %v304
    %422 = vmatpush1.bf16.msra.mxu0 %v303
    %423 = vmatprep.subr.bf16.mxu0 %v298
    %424 = vmatpush1.bf16.msra.mxu0 %v297
    %425 = vmatprep.subr.bf16.mxu0 0
    %426 = vmatpush2.bf16.msra.mxu0 0
    %427 = vmatprep.subr.bf16.mxu0 0
    %428 = vmatpush2.bf16.msra.mxu0 0
    %429 = vmatprep.subr.bf16.mxu0 0
    %430 = vmatpush2.bf16.msra.mxu0 0
    %431 = vmatprep.subr.bf16.mxu0 0
    %432 = vmatpush2.bf16.msra.mxu0 0
    %433 = vmatprep.subr.bf16.mxu0 0
    %434 = vmatpush2.bf16.msra.mxu0 0
    %435 = vmatprep.subr.bf16.mxu0 0
    %436 = vmatpush2.bf16.msra.mxu0 0
    %437 = vmatprep.subr.bf16.mxu0 0
    %438 = vmatpush2.bf16.msra.mxu0 0
    %439 = vmatprep.subr.bf16.mxu0 %v346
    %440 = vmatpush2.bf16.msra.mxu0 %v345
    %441 = vmatprep.mubr.bf16.mxu0 %v407
    %442 = vmatmul.mubr.bf16.gmra.mxu0 %v132
    %v443 = vpop.f32.mrf.mxu0
    %v444 = vadd.f32 0.0, %v443
    %v445 = vpop.f32.mrf.mxu0
    %v446 = vadd.f32 0.0, %v445
    %v447 = vpop.f32.mrf.mxu0
    %v448 = vadd.f32 0.0, %v447
    %v449 = vpop.f32.mrf.mxu0
    %v450 = vadd.f32 0.0, %v449
    %451 = vdwg.mxu0
    %452 = vmatprep.subr.bf16.mxu0 %v342
    %453 = vmatpush1.bf16.msra.mxu0 %v341
    %454 = vmatprep.subr.bf16.mxu0 %v336
    %455 = vmatpush1.bf16.msra.mxu0 %v335
    %456 = vmatprep.subr.bf16.mxu0 %v330
    %457 = vmatpush1.bf16.msra.mxu0 %v329
    %458 = vmatprep.subr.bf16.mxu0 %v324
    %459 = vmatpush1.bf16.msra.mxu0 %v323
    %460 = vmatprep.subr.bf16.mxu0 %v318
    %461 = vmatpush1.bf16.msra.mxu0 %v317
    %462 = vmatprep.subr.bf16.mxu0 %v312
    %463 = vmatpush1.bf16.msra.mxu0 %v311
    %464 = vmatprep.subr.bf16.mxu0 %v306
    %465 = vmatpush1.bf16.msra.mxu0 %v305
    %466 = vmatprep.subr.bf16.mxu0 %v300
    %467 = vmatpush1.bf16.msra.mxu0 %v299
    %468 = vmatprep.subr.bf16.mxu0 0
    %469 = vmatpush2.bf16.msra.mxu0 0
    %470 = vmatprep.subr.bf16.mxu0 0
    %471 = vmatpush2.bf16.msra.mxu0 0
    %472 = vmatprep.subr.bf16.mxu0 0
    %473 = vmatpush2.bf16.msra.mxu0 0
    %474 = vmatprep.subr.bf16.mxu0 0
    %475 = vmatpush2.bf16.msra.mxu0 0
    %476 = vmatprep.subr.bf16.mxu0 0
    %477 = vmatpush2.bf16.msra.mxu0 0
    %478 = vmatprep.subr.bf16.mxu0 0
    %479 = vmatpush2.bf16.msra.mxu0 0
    %480 = vmatprep.subr.bf16.mxu0 0
    %481 = vmatpush2.bf16.msra.mxu0 0
    %482 = vmatprep.subr.bf16.mxu0 %v348
    %483 = vmatpush2.bf16.msra.mxu0 %v347
    %484 = vmatprep.mubr.bf16.mxu0 %v407
    %485 = vmatmul.mubr.bf16.gmra.mxu0 %v132
    %v486 = vpop.f32.mrf.mxu0
    %v487 = vadd.f32 0.0, %v486
    %v488 = vpop.f32.mrf.mxu0
    %v489 = vadd.f32 0.0, %v488
    %v490 = vpop.f32.mrf.mxu0
    %v491 = vadd.f32 0.0, %v490
    %v492 = vpop.f32.mrf.mxu0
    %v493 = vadd.f32 0.0, %v492
    %494 = vdwg.mxu0
    %495 = vmatprep.subr.bf16.mxu0 %v344
    %496 = vmatpush1.bf16.msra.mxu0 %v343
    %497 = vmatprep.subr.bf16.mxu0 %v338
    %498 = vmatpush1.bf16.msra.mxu0 %v337
    %499 = vmatprep.subr.bf16.mxu0 %v332
    %500 = vmatpush1.bf16.msra.mxu0 %v331
    %501 = vmatprep.subr.bf16.mxu0 %v326
    %502 = vmatpush1.bf16.msra.mxu0 %v325
    %503 = vmatprep.subr.bf16.mxu0 %v320
    %504 = vmatpush1.bf16.msra.mxu0 %v319
    %505 = vmatprep.subr.bf16.mxu0 %v314
    %506 = vmatpush1.bf16.msra.mxu0 %v313
    %507 = vmatprep.subr.bf16.mxu0 %v308
    %508 = vmatpush1.bf16.msra.mxu0 %v307
    %509 = vmatprep.subr.bf16.mxu0 %v302
    %510 = vmatpush1.bf16.msra.mxu0 %v301
    %511 = vmatprep.subr.bf16.mxu0 0
    %512 = vmatpush2.bf16.msra.mxu0 0
    %513 = vmatprep.subr.bf16.mxu0 0
    %514 = vmatpush2.bf16.msra.mxu0 0
    %515 = vmatprep.subr.bf16.mxu0 0
    %516 = vmatpush2.bf16.msra.mxu0 0
    %517 = vmatprep.subr.bf16.mxu0 0
    %518 = vmatpush2.bf16.msra.mxu0 0
    %519 = vmatprep.subr.bf16.mxu0 0
    %520 = vmatpush2.bf16.msra.mxu0 0
    %521 = vmatprep.subr.bf16.mxu0 0
    %522 = vmatpush2.bf16.msra.mxu0 0
    %523 = vmatprep.subr.bf16.mxu0 0
    %524 = vmatpush2.bf16.msra.mxu0 0
    %525 = vmatprep.subr.bf16.mxu0 %v350
    %526 = vmatpush2.bf16.msra.mxu0 %v349
    %527 = vmatprep.mubr.bf16.mxu0 %v407
    %528 = vmatmul.mubr.bf16.gmra.mxu0 %v132
    %v529 = vpop.f32.mrf.mxu0
    %v530 = vadd.f32 0.0, %v529
    %v531 = vpop.f32.mrf.mxu0
    %v532 = vadd.f32 0.0, %v531
    %v533 = vpop.f32.mrf.mxu0
    %v534 = vadd.f32 0.0, %v533
    %v535 = vpop.f32.mrf.mxu0
    %v536 = vadd.f32 0.0, %v535
    %537 = vdwg.mxu0
    %v538 = vld [vmem:[#allocation7] sm:$0x3f]
    %v540 = vlaneseq
    %v541 = vshrl.u32 %v540, 7
    %v542 = vsub.s32 0, %v541
    %v543 = vrot.slane %v538, %v542
    %v544 = vlaneseq
    %v545 = vshrl.u32 %v544, 7
    %v546 = vsub.s32 1, %v545
    %v547 = vrot.slane %v538, %v546
    %v548 = vlaneseq
    %v549 = vshrl.u32 %v548, 7
    %v550 = vsub.s32 2, %v549
    %v551 = vrot.slane %v538, %v550
    %v552 = vlaneseq
    %v553 = vshrl.u32 %v552, 7
    %v554 = vsub.s32 3, %v553
    %v555 = vrot.slane %v538, %v554
    %v556 = vlaneseq
    %v557 = vshrl.u32 %v556, 7
    %v558 = vsub.s32 4, %v557
    %v559 = vrot.slane %v538, %v558
    %v560 = vlaneseq
    %v561 = vshrl.u32 %v560, 7
    %v562 = vsub.s32 5, %v561
    %v563 = vrot.slane %v538, %v562
    %v570 = vmul.f32 %v444, %v543
    %v571 = vmul.f32 %v446, %v547
    %v572 = vmul.f32 %v487, %v551
    %v573 = vmul.f32 %v489, %v555
    %v574 = vmul.f32 %v530, %v559
    %v575 = vmul.f32 %v532, %v563
    %v576 = vmul.f32 %v448, %v543
    %v577 = vmul.f32 %v450, %v547
    %v578 = vmul.f32 %v491, %v551
    %v579 = vmul.f32 %v493, %v555
    %v580 = vmul.f32 %v534, %v559
    %v581 = vmul.f32 %v536, %v563
    %v582 = vld [vmem:[#allocation8] sm:$0x3f]
    %v584 = vlaneseq
    %v585 = vshrl.u32 %v584, 7
    %v586 = vsub.s32 0, %v585
    %v587 = vrot.slane %v582, %v586
    %v588 = vlaneseq
    %v589 = vshrl.u32 %v588, 7
    %v590 = vsub.s32 1, %v589
    %v591 = vrot.slane %v582, %v590
    %v592 = vlaneseq
    %v593 = vshrl.u32 %v592, 7
    %v594 = vsub.s32 2, %v593
    %v595 = vrot.slane %v582, %v594
    %v596 = vlaneseq
    %v597 = vshrl.u32 %v596, 7
    %v598 = vsub.s32 3, %v597
    %v599 = vrot.slane %v582, %v598
    %v600 = vlaneseq
    %v601 = vshrl.u32 %v600, 7
    %v602 = vsub.s32 4, %v601
    %v603 = vrot.slane %v582, %v602
    %v604 = vlaneseq
    %v605 = vshrl.u32 %v604, 7
    %v606 = vsub.s32 5, %v605
    %v607 = vrot.slane %v582, %v606
    %v614 = vadd.f32 %v570, %v587
    %v615 = vadd.f32 %v571, %v591
    %v616 = vadd.f32 %v572, %v595
    %v617 = vadd.f32 %v573, %v599
    %v618 = vadd.f32 %v574, %v603
    %v619 = vadd.f32 %v575, %v607
    %v620 = vadd.f32 %v576, %v587
    %v621 = vadd.f32 %v577, %v591
    %v622 = vadd.f32 %v578, %v595
    %v623 = vadd.f32 %v579, %v599
    %v624 = vadd.f32 %v580, %v603
    %v625 = vadd.f32 %v581, %v607
    %v626 = vand.u32 2147483647, %v614
    %vm627 = vcmp.le.f32.partialorder %v626, 0.7853982
    %vm628 = vcmp.lt.s32.totalorder %v614, 0
    %v629 = vand.u32 %v614, 2139095040
    %v630 = vshrl.u32 %v629, 23
    %v631 = vsub.s32 %v630, 127
    %v632 = vand.u32 2147483647, %v614
    %v633 = vand.u32 %v632, 8388607
    %v634 = vor.u32 %v633, 8388608
    %v635 = vsub.s32 0, %v634
    %v636 = vadd.s32 %v631, 1
    %vm637 = vcmp.gt.s32.totalorder %v636, 0
    %v638 = vsel %vm637, %v636, 0
    %v639 = vshrl.u32 %v638, 5
    %v640 = vand.u32 %v638, 31
    %v641 = vsub.s32 32, %v640
    %v642 = vshrl.u32 683565275, %v641
    %v643 = vshll.u32 683565275, %v640
    %v644 = vshrl.u32 2475754826, %v641
    %v645 = vor.u32 %v643, %v644
    %v646 = vshll.u32 2475754826, %v640
    %v647 = vshrl.u32 2131351028, %v641
    %v648 = vor.u32 %v646, %v647
    %v649 = vshll.u32 2131351028, %v640
    %v650 = vshrl.u32 2102212464, %v641
    %v651 = vor.u32 %v649, %v650
    %v652 = vshll.u32 2102212464, %v640
    %v653 = vshrl.u32 920167782, %v641
    %v654 = vor.u32 %v652, %v653
    %v655 = vshll.u32 920167782, %v640
    %v656 = vshrl.u32 1326507024, %v641
    %v657 = vor.u32 %v655, %v656
    %vm658 = vcmp.lt.s32.totalorder %v639, 1
    %vm659 = vcmp.lt.s32.totalorder %v639, 2
    %vm660 = vcmp.lt.s32.totalorder %v639, 3
    %vm661 = vcmp.lt.s32.totalorder %v639, 4
    %v662 = vsel %vm658, %v642, %v645
    %v663 = vsel %vm661, %v651, 2102212464
    %v664 = vsel %vm660, %v648, %v663
    %v665 = vsel %vm659, %v662, %v664
    %v666 = vsel %vm658, %v645, %v648
    %v667 = vsel %vm661, %v654, 920167782
    %v668 = vsel %vm660, %v651, %v667
    %v669 = vsel %vm659, %v666, %v668
    %v670 = vsel %vm658, %v648, %v651
    %v671 = vsel %vm661, %v657, 1326507024
    %v672 = vsel %vm660, %v654, %v671
    %v673 = vsel %vm659, %v670, %v672
    %v674 = vshll.u32 %v634, 8
    %v675 = vmul.u32.u64.compose %v674, %v673
    %v676 = vextract.low.u32 %v675
    %v677 = vextract.high.u32 %v675
    %v678 = vmul.u32.u64.compose %v674, %v669
    %v679 = vextract.low.u32 %v678
    %v680 = vextract.high.u32 %v678
    %v681 = vmul.u32 %v674, %v665
    %v682 = vadd.s32 %v677, %v679
    %vm683 = vc.u32 %v677, %v679
    %v684 = vadd.s32 %v680, 1
    %v685 = vsel %vm683, %v684, %v680
    %v686 = vadd.s32 %v681, %v685
    %v687 = vadd.s32 %v686, 536870912
    %v688 = vshrl.u32 %v687, 30
    %v689 = vshll.u32 %v688, 30
    %v690 = vsub.s32 %v686, %v689
    %vm691 = vcmp.lt.s32.totalorder %v690, 0
    %v692 = vsub.s32 0, %v690
    %v693 = vsel %vm691, %v692, %v690
    %v694 = vclz %v693
    %v695 = vsub.s32 %v694, 2
    %vm696 = vcmp.gt.s32.totalorder 0, %v695
    %v697 = vsel %vm696, 0, %v695
    %v698 = vsub.s32 32, %v697
    %v699 = vshll.u32 %v690, %v697
    %v700 = vshrl.u32 %v682, %v698
    %v701 = vor.u32 %v699, %v700
    %v702 = vsub.s32 4294967266, %v697
    %v703 = vadd.s32 %v702, 127
    %v704 = vshll.u32 %v703, 23
    %v705 = vor.u32 4788187, %v704
    %v706 = vand.u32 2147483647, %v705
    %v708 = vcvt.s32.f32 %v701
    %v709 = vmul.f32 %v708, %v706
    %v710 = vxor.u32 %v709, 2147483648
    %v711 = vsel %vm628, %v710, %v709
    %v712 = vsub.s32 4, %v688
    %v713 = vsel %vm628, %v712, %v688
    %v714 = vsel %vm627, %v614, %v711
    %v715 = vsel %vm627, 0, %v713
    %v716 = vcosq.f32.pop %v714
    %v717 = vsinq.f32.pop %v714
    %vm718 = vweird.f32 %v614
    %v719 = vadd.s32 %v715, 3
    %v720 = vand.u32 %v719, 3
    %vm721 = vcmp.lt.s32.totalorder %v720, 2
    %vm722 = vcmp.eq.s32.totalorder %v720, 0
    %v723 = vxor.u32 %v717, 2147483648
    %v724 = vsel %vm722, %v716, %v723
    %vm725 = vcmp.eq.s32.totalorder %v720, 2
    %v726 = vxor.u32 %v716, 2147483648
    %v727 = vsel %vm725, %v726, %v717
    %v728 = vsel %vm721, %v724, %v727
    %v729 = vsel %vm718, nan, %v728
    %v730 = vand.u32 2147483647, %v615
    %vm731 = vcmp.le.f32.partialorder %v730, 0.7853982
    %vm732 = vcmp.lt.s32.totalorder %v615, 0
    %v733 = vand.u32 %v615, 2139095040
    %v734 = vshrl.u32 %v733, 23
    %v735 = vsub.s32 %v734, 127
    %v736 = vand.u32 2147483647, %v615
    %v737 = vand.u32 %v736, 8388607
    %v738 = vor.u32 %v737, 8388608
    %v739 = vsub.s32 0, %v738
    %v740 = vadd.s32 %v735, 1
    %vm741 = vcmp.gt.s32.totalorder %v740, 0
    %v742 = vsel %vm741, %v740, 0
    %v743 = vshrl.u32 %v742, 5
    %v744 = vand.u32 %v742, 31
    %v745 = vsub.s32 32, %v744
    %v746 = vshrl.u32 683565275, %v745
    %v747 = vshll.u32 683565275, %v744
    %v748 = vshrl.u32 2475754826, %v745
    %v749 = vor.u32 %v747, %v748
    %v750 = vshll.u32 2475754826, %v744
    %v751 = vshrl.u32 2131351028, %v745
    %v752 = vor.u32 %v750, %v751
    %v753 = vshll.u32 2131351028, %v744
    %v754 = vshrl.u32 2102212464, %v745
    %v755 = vor.u32 %v753, %v754
    %v756 = vshll.u32 2102212464, %v744
    %v757 = vshrl.u32 920167782, %v745
    %v758 = vor.u32 %v756, %v757
    %v759 = vshll.u32 920167782, %v744
    %v760 = vshrl.u32 1326507024, %v745
    %v761 = vor.u32 %v759, %v760
    %vm762 = vcmp.lt.s32.totalorder %v743, 1
    %vm763 = vcmp.lt.s32.totalorder %v743, 2
    %vm764 = vcmp.lt.s32.totalorder %v743, 3
    %vm765 = vcmp.lt.s32.totalorder %v743, 4
    %v766 = vsel %vm762, %v746, %v749
    %v767 = vsel %vm765, %v755, 2102212464
    %v768 = vsel %vm764, %v752, %v767
    %v769 = vsel %vm763, %v766, %v768
    %v770 = vsel %vm762, %v749, %v752
    %v771 = vsel %vm765, %v758, 920167782
    %v772 = vsel %vm764, %v755, %v771
    %v773 = vsel %vm763, %v770, %v772
    %v774 = vsel %vm762, %v752, %v755
    %v775 = vsel %vm765, %v761, 1326507024
    %v776 = vsel %vm764, %v758, %v775
    %v777 = vsel %vm763, %v774, %v776
    %v778 = vshll.u32 %v738, 8
    %v779 = vmul.u32.u64.compose %v778, %v777
    %v780 = vextract.low.u32 %v779
    %v781 = vextract.high.u32 %v779
    %v782 = vmul.u32.u64.compose %v778, %v773
    %v783 = vextract.low.u32 %v782
    %v784 = vextract.high.u32 %v782
    %v785 = vmul.u32 %v778, %v769
    %v786 = vadd.s32 %v781, %v783
    %vm787 = vc.u32 %v781, %v783
    %v788 = vadd.s32 %v784, 1
    %v789 = vsel %vm787, %v788, %v784
    %v790 = vadd.s32 %v785, %v789
    %v791 = vadd.s32 %v790, 536870912
    %v792 = vshrl.u32 %v791, 30
    %v793 = vshll.u32 %v792, 30
    %v794 = vsub.s32 %v790, %v793
    %vm795 = vcmp.lt.s32.totalorder %v794, 0
    %v796 = vsub.s32 0, %v794
    %v797 = vsel %vm795, %v796, %v794
    %v798 = vclz %v797
    %v799 = vsub.s32 %v798, 2
    %vm800 = vcmp.gt.s32.totalorder 0, %v799
    %v801 = vsel %vm800, 0, %v799
    %v802 = vsub.s32 32, %v801
    %v803 = vshll.u32 %v794, %v801
    %v804 = vshrl.u32 %v786, %v802
    %v805 = vor.u32 %v803, %v804
    %v806 = vsub.s32 4294967266, %v801
    %v807 = vadd.s32 %v806, 127
    %v808 = vshll.u32 %v807, 23
    %v809 = vor.u32 4788187, %v808
    %v810 = vand.u32 2147483647, %v809
    %v812 = vcvt.s32.f32 %v805
    %v813 = vmul.f32 %v812, %v810
    %v814 = vxor.u32 %v813, 2147483648
    %v815 = vsel %vm732, %v814, %v813
    %v816 = vsub.s32 4, %v792
    %v817 = vsel %vm732, %v816, %v792
    %v818 = vsel %vm731, %v615, %v815
    %v819 = vsel %vm731, 0, %v817
    %v820 = vcosq.f32.pop %v818
    %v821 = vsinq.f32.pop %v818
    %vm822 = vweird.f32 %v615
    %v823 = vadd.s32 %v819, 3
    %v824 = vand.u32 %v823, 3
    %vm825 = vcmp.lt.s32.totalorder %v824, 2
    %vm826 = vcmp.eq.s32.totalorder %v824, 0
    %v827 = vxor.u32 %v821, 2147483648
    %v828 = vsel %vm826, %v820, %v827
    %vm829 = vcmp.eq.s32.totalorder %v824, 2
    %v830 = vxor.u32 %v820, 2147483648
    %v831 = vsel %vm829, %v830, %v821
    %v832 = vsel %vm825, %v828, %v831
    %v833 = vsel %vm822, nan, %v832
    %v834 = vand.u32 2147483647, %v616
    %vm835 = vcmp.le.f32.partialorder %v834, 0.7853982
    %vm836 = vcmp.lt.s32.totalorder %v616, 0
    %v837 = vand.u32 %v616, 2139095040
    %v838 = vshrl.u32 %v837, 23
    %v839 = vsub.s32 %v838, 127
    %v840 = vand.u32 2147483647, %v616
    %v841 = vand.u32 %v840, 8388607
    %v842 = vor.u32 %v841, 8388608
    %v843 = vsub.s32 0, %v842
    %v844 = vadd.s32 %v839, 1
    %vm845 = vcmp.gt.s32.totalorder %v844, 0
    %v846 = vsel %vm845, %v844, 0
    %v847 = vshrl.u32 %v846, 5
    %v848 = vand.u32 %v846, 31
    %v849 = vsub.s32 32, %v848
    %v850 = vshrl.u32 683565275, %v849
    %v851 = vshll.u32 683565275, %v848
    %v852 = vshrl.u32 2475754826, %v849
    %v853 = vor.u32 %v851, %v852
    %v854 = vshll.u32 2475754826, %v848
    %v855 = vshrl.u32 2131351028, %v849
    %v856 = vor.u32 %v854, %v855
    %v857 = vshll.u32 2131351028, %v848
    %v858 = vshrl.u32 2102212464, %v849
    %v859 = vor.u32 %v857, %v858
    %v860 = vshll.u32 2102212464, %v848
    %v861 = vshrl.u32 920167782, %v849
    %v862 = vor.u32 %v860, %v861
    %v863 = vshll.u32 920167782, %v848
    %v864 = vshrl.u32 1326507024, %v849
    %v865 = vor.u32 %v863, %v864
    %vm866 = vcmp.lt.s32.totalorder %v847, 1
    %vm867 = vcmp.lt.s32.totalorder %v847, 2
    %vm868 = vcmp.lt.s32.totalorder %v847, 3
    %vm869 = vcmp.lt.s32.totalorder %v847, 4
    %v870 = vsel %vm866, %v850, %v853
    %v871 = vsel %vm869, %v859, 2102212464
    %v872 = vsel %vm868, %v856, %v871
    %v873 = vsel %vm867, %v870, %v872
    %v874 = vsel %vm866, %v853, %v856
    %v875 = vsel %vm869, %v862, 920167782
    %v876 = vsel %vm868, %v859, %v875
    %v877 = vsel %vm867, %v874, %v876
    %v878 = vsel %vm866, %v856, %v859
    %v879 = vsel %vm869, %v865, 1326507024
    %v880 = vsel %vm868, %v862, %v879
    %v881 = vsel %vm867, %v878, %v880
    %v882 = vshll.u32 %v842, 8
    %v883 = vmul.u32.u64.compose %v882, %v881
    %v884 = vextract.low.u32 %v883
    %v885 = vextract.high.u32 %v883
    %v886 = vmul.u32.u64.compose %v882, %v877
    %v887 = vextract.low.u32 %v886
    %v888 = vextract.high.u32 %v886
    %v889 = vmul.u32 %v882, %v873
    %v890 = vadd.s32 %v885, %v887
    %vm891 = vc.u32 %v885, %v887
    %v892 = vadd.s32 %v888, 1
    %v893 = vsel %vm891, %v892, %v888
    %v894 = vadd.s32 %v889, %v893
    %v895 = vadd.s32 %v894, 536870912
    %v896 = vshrl.u32 %v895, 30
    %v897 = vshll.u32 %v896, 30
    %v898 = vsub.s32 %v894, %v897
    %vm899 = vcmp.lt.s32.totalorder %v898, 0
    %v900 = vsub.s32 0, %v898
    %v901 = vsel %vm899, %v900, %v898
    %v902 = vclz %v901
    %v903 = vsub.s32 %v902, 2
    %vm904 = vcmp.gt.s32.totalorder 0, %v903
    %v905 = vsel %vm904, 0, %v903
    %v906 = vsub.s32 32, %v905
    %v907 = vshll.u32 %v898, %v905
    %v908 = vshrl.u32 %v890, %v906
    %v909 = vor.u32 %v907, %v908
    %v910 = vsub.s32 4294967266, %v905
    %v911 = vadd.s32 %v910, 127
    %v912 = vshll.u32 %v911, 23
    %v913 = vor.u32 4788187, %v912
    %v914 = vand.u32 2147483647, %v913
    %v916 = vcvt.s32.f32 %v909
    %v917 = vmul.f32 %v916, %v914
    %v918 = vxor.u32 %v917, 2147483648
    %v919 = vsel %vm836, %v918, %v917
    %v920 = vsub.s32 4, %v896
    %v921 = vsel %vm836, %v920, %v896
    %v922 = vsel %vm835, %v616, %v919
    %v923 = vsel %vm835, 0, %v921
    %v924 = vcosq.f32.pop %v922
    %v925 = vsinq.f32.pop %v922
    %vm926 = vweird.f32 %v616
    %v927 = vadd.s32 %v923, 3
    %v928 = vand.u32 %v927, 3
    %vm929 = vcmp.lt.s32.totalorder %v928, 2
    %vm930 = vcmp.eq.s32.totalorder %v928, 0
    %v931 = vxor.u32 %v925, 2147483648
    %v932 = vsel %vm930, %v924, %v931
    %vm933 = vcmp.eq.s32.totalorder %v928, 2
    %v934 = vxor.u32 %v924, 2147483648
    %v935 = vsel %vm933, %v934, %v925
    %v936 = vsel %vm929, %v932, %v935
    %v937 = vsel %vm926, nan, %v936
    %v938 = vand.u32 2147483647, %v617
    %vm939 = vcmp.le.f32.partialorder %v938, 0.7853982
    %vm940 = vcmp.lt.s32.totalorder %v617, 0
    %v941 = vand.u32 %v617, 2139095040
    %v942 = vshrl.u32 %v941, 23
    %v943 = vsub.s32 %v942, 127
    %v944 = vand.u32 2147483647, %v617
    %v945 = vand.u32 %v944, 8388607
    %v946 = vor.u32 %v945, 8388608
    %v947 = vsub.s32 0, %v946
    %v948 = vadd.s32 %v943, 1
    %vm949 = vcmp.gt.s32.totalorder %v948, 0
    %v950 = vsel %vm949, %v948, 0
    %v951 = vshrl.u32 %v950, 5
    %v952 = vand.u32 %v950, 31
    %v953 = vsub.s32 32, %v952
    %v954 = vshrl.u32 683565275, %v953
    %v955 = vshll.u32 683565275, %v952
    %v956 = vshrl.u32 2475754826, %v953
    %v957 = vor.u32 %v955, %v956
    %v958 = vshll.u32 2475754826, %v952
    %v959 = vshrl.u32 2131351028, %v953
    %v960 = vor.u32 %v958, %v959
    %v961 = vshll.u32 2131351028, %v952
    %v962 = vshrl.u32 2102212464, %v953
    %v963 = vor.u32 %v961, %v962
    %v964 = vshll.u32 2102212464, %v952
    %v965 = vshrl.u32 920167782, %v953
    %v966 = vor.u32 %v964, %v965
    %v967 = vshll.u32 920167782, %v952
    %v968 = vshrl.u32 1326507024, %v953
    %v969 = vor.u32 %v967, %v968
    %vm970 = vcmp.lt.s32.totalorder %v951, 1
    %vm971 = vcmp.lt.s32.totalorder %v951, 2
    %vm972 = vcmp.lt.s32.totalorder %v951, 3
    %vm973 = vcmp.lt.s32.totalorder %v951, 4
    %v974 = vsel %vm970, %v954, %v957
    %v975 = vsel %vm973, %v963, 2102212464
    %v976 = vsel %vm972, %v960, %v975
    %v977 = vsel %vm971, %v974, %v976
    %v978 = vsel %vm970, %v957, %v960
    %v979 = vsel %vm973, %v966, 920167782
    %v980 = vsel %vm972, %v963, %v979
    %v981 = vsel %vm971, %v978, %v980
    %v982 = vsel %vm970, %v960, %v963
    %v983 = vsel %vm973, %v969, 1326507024
    %v984 = vsel %vm972, %v966, %v983
    %v985 = vsel %vm971, %v982, %v984
    %v986 = vshll.u32 %v946, 8
    %v987 = vmul.u32.u64.compose %v986, %v985
    %v988 = vextract.low.u32 %v987
    %v989 = vextract.high.u32 %v987
    %v990 = vmul.u32.u64.compose %v986, %v981
    %v991 = vextract.low.u32 %v990
    %v992 = vextract.high.u32 %v990
    %v993 = vmul.u32 %v986, %v977
    %v994 = vadd.s32 %v989, %v991
    %vm995 = vc.u32 %v989, %v991
    %v996 = vadd.s32 %v992, 1
    %v997 = vsel %vm995, %v996, %v992
    %v998 = vadd.s32 %v993, %v997
    %v999 = vadd.s32 %v998, 536870912
    %v1000 = vshrl.u32 %v999, 30
    %v1001 = vshll.u32 %v1000, 30
    %v1002 = vsub.s32 %v998, %v1001
    %vm1003 = vcmp.lt.s32.totalorder %v1002, 0
    %v1004 = vsub.s32 0, %v1002
    %v1005 = vsel %vm1003, %v1004, %v1002
    %v1006 = vclz %v1005
    %v1007 = vsub.s32 %v1006, 2
    %vm1008 = vcmp.gt.s32.totalorder 0, %v1007
    %v1009 = vsel %vm1008, 0, %v1007
    %v1010 = vsub.s32 32, %v1009
    %v1011 = vshll.u32 %v1002, %v1009
    %v1012 = vshrl.u32 %v994, %v1010
    %v1013 = vor.u32 %v1011, %v1012
    %v1014 = vsub.s32 4294967266, %v1009
    %v1015 = vadd.s32 %v1014, 127
    %v1016 = vshll.u32 %v1015, 23
    %v1017 = vor.u32 4788187, %v1016
    %v1018 = vand.u32 2147483647, %v1017
    %v1020 = vcvt.s32.f32 %v1013
    %v1021 = vmul.f32 %v1020, %v1018
    %v1022 = vxor.u32 %v1021, 2147483648
    %v1023 = vsel %vm940, %v1022, %v1021
    %v1024 = vsub.s32 4, %v1000
    %v1025 = vsel %vm940, %v1024, %v1000
    %v1026 = vsel %vm939, %v617, %v1023
    %v1027 = vsel %vm939, 0, %v1025
    %v1028 = vcosq.f32.pop %v1026
    %v1029 = vsinq.f32.pop %v1026
    %vm1030 = vweird.f32 %v617
    %v1031 = vadd.s32 %v1027, 3
    %v1032 = vand.u32 %v1031, 3
    %vm1033 = vcmp.lt.s32.totalorder %v1032, 2
    %vm1034 = vcmp.eq.s32.totalorder %v1032, 0
    %v1035 = vxor.u32 %v1029, 2147483648
    %v1036 = vsel %vm1034, %v1028, %v1035
    %vm1037 = vcmp.eq.s32.totalorder %v1032, 2
    %v1038 = vxor.u32 %v1028, 2147483648
    %v1039 = vsel %vm1037, %v1038, %v1029
    %v1040 = vsel %vm1033, %v1036, %v1039
    %v1041 = vsel %vm1030, nan, %v1040
    %v1042 = vand.u32 2147483647, %v618
    %vm1043 = vcmp.le.f32.partialorder %v1042, 0.7853982
    %vm1044 = vcmp.lt.s32.totalorder %v618, 0
    %v1045 = vand.u32 %v618, 2139095040
    %v1046 = vshrl.u32 %v1045, 23
    %v1047 = vsub.s32 %v1046, 127
    %v1048 = vand.u32 2147483647, %v618
    %v1049 = vand.u32 %v1048, 8388607
    %v1050 = vor.u32 %v1049, 8388608
    %v1051 = vsub.s32 0, %v1050
    %v1052 = vadd.s32 %v1047, 1
    %vm1053 = vcmp.gt.s32.totalorder %v1052, 0
    %v1054 = vsel %vm1053, %v1052, 0
    %v1055 = vshrl.u32 %v1054, 5
    %v1056 = vand.u32 %v1054, 31
    %v1057 = vsub.s32 32, %v1056
    %v1058 = vshrl.u32 683565275, %v1057
    %v1059 = vshll.u32 683565275, %v1056
    %v1060 = vshrl.u32 2475754826, %v1057
    %v1061 = vor.u32 %v1059, %v1060
    %v1062 = vshll.u32 2475754826, %v1056
    %v1063 = vshrl.u32 2131351028, %v1057
    %v1064 = vor.u32 %v1062, %v1063
    %v1065 = vshll.u32 2131351028, %v1056
    %v1066 = vshrl.u32 2102212464, %v1057
    %v1067 = vor.u32 %v1065, %v1066
    %v1068 = vshll.u32 2102212464, %v1056
    %v1069 = vshrl.u32 920167782, %v1057
    %v1070 = vor.u32 %v1068, %v1069
    %v1071 = vshll.u32 920167782, %v1056
    %v1072 = vshrl.u32 1326507024, %v1057
    %v1073 = vor.u32 %v1071, %v1072
    %vm1074 = vcmp.lt.s32.totalorder %v1055, 1
    %vm1075 = vcmp.lt.s32.totalorder %v1055, 2
    %vm1076 = vcmp.lt.s32.totalorder %v1055, 3
    %vm1077 = vcmp.lt.s32.totalorder %v1055, 4
    %v1078 = vsel %vm1074, %v1058, %v1061
    %v1079 = vsel %vm1077, %v1067, 2102212464
    %v1080 = vsel %vm1076, %v1064, %v1079
    %v1081 = vsel %vm1075, %v1078, %v1080
    %v1082 = vsel %vm1074, %v1061, %v1064
    %v1083 = vsel %vm1077, %v1070, 920167782
    %v1084 = vsel %vm1076, %v1067, %v1083
    %v1085 = vsel %vm1075, %v1082, %v1084
    %v1086 = vsel %vm1074, %v1064, %v1067
    %v1087 = vsel %vm1077, %v1073, 1326507024
    %v1088 = vsel %vm1076, %v1070, %v1087
    %v1089 = vsel %vm1075, %v1086, %v1088
    %v1090 = vshll.u32 %v1050, 8
    %v1091 = vmul.u32.u64.compose %v1090, %v1089
    %v1092 = vextract.low.u32 %v1091
    %v1093 = vextract.high.u32 %v1091
    %v1094 = vmul.u32.u64.compose %v1090, %v1085
    %v1095 = vextract.low.u32 %v1094
    %v1096 = vextract.high.u32 %v1094
    %v1097 = vmul.u32 %v1090, %v1081
    %v1098 = vadd.s32 %v1093, %v1095
    %vm1099 = vc.u32 %v1093, %v1095
    %v1100 = vadd.s32 %v1096, 1
    %v1101 = vsel %vm1099, %v1100, %v1096
    %v1102 = vadd.s32 %v1097, %v1101
    %v1103 = vadd.s32 %v1102, 536870912
    %v1104 = vshrl.u32 %v1103, 30
    %v1105 = vshll.u32 %v1104, 30
    %v1106 = vsub.s32 %v1102, %v1105
    %vm1107 = vcmp.lt.s32.totalorder %v1106, 0
    %v1108 = vsub.s32 0, %v1106
    %v1109 = vsel %vm1107, %v1108, %v1106
    %v1110 = vclz %v1109
    %v1111 = vsub.s32 %v1110, 2
    %vm1112 = vcmp.gt.s32.totalorder 0, %v1111
    %v1113 = vsel %vm1112, 0, %v1111
    %v1114 = vsub.s32 32, %v1113
    %v1115 = vshll.u32 %v1106, %v1113
    %v1116 = vshrl.u32 %v1098, %v1114
    %v1117 = vor.u32 %v1115, %v1116
    %v1118 = vsub.s32 4294967266, %v1113
    %v1119 = vadd.s32 %v1118, 127
    %v1120 = vshll.u32 %v1119, 23
    %v1121 = vor.u32 4788187, %v1120
    %v1122 = vand.u32 2147483647, %v1121
    %v1124 = vcvt.s32.f32 %v1117
    %v1125 = vmul.f32 %v1124, %v1122
    %v1126 = vxor.u32 %v1125, 2147483648
    %v1127 = vsel %vm1044, %v1126, %v1125
    %v1128 = vsub.s32 4, %v1104
    %v1129 = vsel %vm1044, %v1128, %v1104
    %v1130 = vsel %vm1043, %v618, %v1127
    %v1131 = vsel %vm1043, 0, %v1129
    %v1132 = vcosq.f32.pop %v1130
    %v1133 = vsinq.f32.pop %v1130
    %vm1134 = vweird.f32 %v618
    %v1135 = vadd.s32 %v1131, 3
    %v1136 = vand.u32 %v1135, 3
    %vm1137 = vcmp.lt.s32.totalorder %v1136, 2
    %vm1138 = vcmp.eq.s32.totalorder %v1136, 0
    %v1139 = vxor.u32 %v1133, 2147483648
    %v1140 = vsel %vm1138, %v1132, %v1139
    %vm1141 = vcmp.eq.s32.totalorder %v1136, 2
    %v1142 = vxor.u32 %v1132, 2147483648
    %v1143 = vsel %vm1141, %v1142, %v1133
    %v1144 = vsel %vm1137, %v1140, %v1143
    %v1145 = vsel %vm1134, nan, %v1144
    %v1146 = vand.u32 2147483647, %v619
    %vm1147 = vcmp.le.f32.partialorder %v1146, 0.7853982
    %vm1148 = vcmp.lt.s32.totalorder %v619, 0
    %v1149 = vand.u32 %v619, 2139095040
    %v1150 = vshrl.u32 %v1149, 23
    %v1151 = vsub.s32 %v1150, 127
    %v1152 = vand.u32 2147483647, %v619
    %v1153 = vand.u32 %v1152, 8388607
    %v1154 = vor.u32 %v1153, 8388608
    %v1155 = vsub.s32 0, %v1154
    %v1156 = vadd.s32 %v1151, 1
    %vm1157 = vcmp.gt.s32.totalorder %v1156, 0
    %v1158 = vsel %vm1157, %v1156, 0
    %v1159 = vshrl.u32 %v1158, 5
    %v1160 = vand.u32 %v1158, 31
    %v1161 = vsub.s32 32, %v1160
    %v1162 = vshrl.u32 683565275, %v1161
    %v1163 = vshll.u32 683565275, %v1160
    %v1164 = vshrl.u32 2475754826, %v1161
    %v1165 = vor.u32 %v1163, %v1164
    %v1166 = vshll.u32 2475754826, %v1160
    %v1167 = vshrl.u32 2131351028, %v1161
    %v1168 = vor.u32 %v1166, %v1167
    %v1169 = vshll.u32 2131351028, %v1160
    %v1170 = vshrl.u32 2102212464, %v1161
    %v1171 = vor.u32 %v1169, %v1170
    %v1172 = vshll.u32 2102212464, %v1160
    %v1173 = vshrl.u32 920167782, %v1161
    %v1174 = vor.u32 %v1172, %v1173
    %v1175 = vshll.u32 920167782, %v1160
    %v1176 = vshrl.u32 1326507024, %v1161
    %v1177 = vor.u32 %v1175, %v1176
    %vm1178 = vcmp.lt.s32.totalorder %v1159, 1
    %vm1179 = vcmp.lt.s32.totalorder %v1159, 2
    %vm1180 = vcmp.lt.s32.totalorder %v1159, 3
    %vm1181 = vcmp.lt.s32.totalorder %v1159, 4
    %v1182 = vsel %vm1178, %v1162, %v1165
    %v1183 = vsel %vm1181, %v1171, 2102212464
    %v1184 = vsel %vm1180, %v1168, %v1183
    %v1185 = vsel %vm1179, %v1182, %v1184
    %v1186 = vsel %vm1178, %v1165, %v1168
    %v1187 = vsel %vm1181, %v1174, 920167782
    %v1188 = vsel %vm1180, %v1171, %v1187
    %v1189 = vsel %vm1179, %v1186, %v1188
    %v1190 = vsel %vm1178, %v1168, %v1171
    %v1191 = vsel %vm1181, %v1177, 1326507024
    %v1192 = vsel %vm1180, %v1174, %v1191
    %v1193 = vsel %vm1179, %v1190, %v1192
    %v1194 = vshll.u32 %v1154, 8
    %v1195 = vmul.u32.u64.compose %v1194, %v1193
    %v1196 = vextract.low.u32 %v1195
    %v1197 = vextract.high.u32 %v1195
    %v1198 = vmul.u32.u64.compose %v1194, %v1189
    %v1199 = vextract.low.u32 %v1198
    %v1200 = vextract.high.u32 %v1198
    %v1201 = vmul.u32 %v1194, %v1185
    %v1202 = vadd.s32 %v1197, %v1199
    %vm1203 = vc.u32 %v1197, %v1199
    %v1204 = vadd.s32 %v1200, 1
    %v1205 = vsel %vm1203, %v1204, %v1200
    %v1206 = vadd.s32 %v1201, %v1205
    %v1207 = vadd.s32 %v1206, 536870912
    %v1208 = vshrl.u32 %v1207, 30
    %v1209 = vshll.u32 %v1208, 30
    %v1210 = vsub.s32 %v1206, %v1209
    %vm1211 = vcmp.lt.s32.totalorder %v1210, 0
    %v1212 = vsub.s32 0, %v1210
    %v1213 = vsel %vm1211, %v1212, %v1210
    %v1214 = vclz %v1213
    %v1215 = vsub.s32 %v1214, 2
    %vm1216 = vcmp.gt.s32.totalorder 0, %v1215
    %v1217 = vsel %vm1216, 0, %v1215
    %v1218 = vsub.s32 32, %v1217
    %v1219 = vshll.u32 %v1210, %v1217
    %v1220 = vshrl.u32 %v1202, %v1218
    %v1221 = vor.u32 %v1219, %v1220
    %v1222 = vsub.s32 4294967266, %v1217
    %v1223 = vadd.s32 %v1222, 127
    %v1224 = vshll.u32 %v1223, 23
    %v1225 = vor.u32 4788187, %v1224
    %v1226 = vand.u32 2147483647, %v1225
    %v1228 = vcvt.s32.f32 %v1221
    %v1229 = vmul.f32 %v1228, %v1226
    %v1230 = vxor.u32 %v1229, 2147483648
    %v1231 = vsel %vm1148, %v1230, %v1229
    %v1232 = vsub.s32 4, %v1208
    %v1233 = vsel %vm1148, %v1232, %v1208
    %v1234 = vsel %vm1147, %v619, %v1231
    %v1235 = vsel %vm1147, 0, %v1233
    %v1236 = vcosq.f32.pop %v1234
    %v1237 = vsinq.f32.pop %v1234
    %vm1238 = vweird.f32 %v619
    %v1239 = vadd.s32 %v1235, 3
    %v1240 = vand.u32 %v1239, 3
    %vm1241 = vcmp.lt.s32.totalorder %v1240, 2
    %vm1242 = vcmp.eq.s32.totalorder %v1240, 0
    %v1243 = vxor.u32 %v1237, 2147483648
    %v1244 = vsel %vm1242, %v1236, %v1243
    %vm1245 = vcmp.eq.s32.totalorder %v1240, 2
    %v1246 = vxor.u32 %v1236, 2147483648
    %v1247 = vsel %vm1245, %v1246, %v1237
    %v1248 = vsel %vm1241, %v1244, %v1247
    %v1249 = vsel %vm1238, nan, %v1248
    %v1250 = vand.u32 2147483647, %v620
    %vm1251 = vcmp.le.f32.partialorder %v1250, 0.7853982
    %vm1252 = vcmp.lt.s32.totalorder %v620, 0
    %v1253 = vand.u32 %v620, 2139095040
    %v1254 = vshrl.u32 %v1253, 23
    %v1255 = vsub.s32 %v1254, 127
    %v1256 = vand.u32 2147483647, %v620
    %v1257 = vand.u32 %v1256, 8388607
    %v1258 = vor.u32 %v1257, 8388608
    %v1259 = vsub.s32 0, %v1258
    %v1260 = vadd.s32 %v1255, 1
    %vm1261 = vcmp.gt.s32.totalorder %v1260, 0
    %v1262 = vsel %vm1261, %v1260, 0
    %v1263 = vshrl.u32 %v1262, 5
    %v1264 = vand.u32 %v1262, 31
    %v1265 = vsub.s32 32, %v1264
    %v1266 = vshrl.u32 683565275, %v1265
    %v1267 = vshll.u32 683565275, %v1264
    %v1268 = vshrl.u32 2475754826, %v1265
    %v1269 = vor.u32 %v1267, %v1268
    %v1270 = vshll.u32 2475754826, %v1264
    %v1271 = vshrl.u32 2131351028, %v1265
    %v1272 = vor.u32 %v1270, %v1271
    %v1273 = vshll.u32 2131351028, %v1264
    %v1274 = vshrl.u32 2102212464, %v1265
    %v1275 = vor.u32 %v1273, %v1274
    %v1276 = vshll.u32 2102212464, %v1264
    %v1277 = vshrl.u32 920167782, %v1265
    %v1278 = vor.u32 %v1276, %v1277
    %v1279 = vshll.u32 920167782, %v1264
    %v1280 = vshrl.u32 1326507024, %v1265
    %v1281 = vor.u32 %v1279, %v1280
    %vm1282 = vcmp.lt.s32.totalorder %v1263, 1
    %vm1283 = vcmp.lt.s32.totalorder %v1263, 2
    %vm1284 = vcmp.lt.s32.totalorder %v1263, 3
    %vm1285 = vcmp.lt.s32.totalorder %v1263, 4
    %v1286 = vsel %vm1282, %v1266, %v1269
    %v1287 = vsel %vm1285, %v1275, 2102212464
    %v1288 = vsel %vm1284, %v1272, %v1287
    %v1289 = vsel %vm1283, %v1286, %v1288
    %v1290 = vsel %vm1282, %v1269, %v1272
    %v1291 = vsel %vm1285, %v1278, 920167782
    %v1292 = vsel %vm1284, %v1275, %v1291
    %v1293 = vsel %vm1283, %v1290, %v1292
    %v1294 = vsel %vm1282, %v1272, %v1275
    %v1295 = vsel %vm1285, %v1281, 1326507024
    %v1296 = vsel %vm1284, %v1278, %v1295
    %v1297 = vsel %vm1283, %v1294, %v1296
    %v1298 = vshll.u32 %v1258, 8
    %v1299 = vmul.u32.u64.compose %v1298, %v1297
    %v1300 = vextract.low.u32 %v1299
    %v1301 = vextract.high.u32 %v1299
    %v1302 = vmul.u32.u64.compose %v1298, %v1293
    %v1303 = vextract.low.u32 %v1302
    %v1304 = vextract.high.u32 %v1302
    %v1305 = vmul.u32 %v1298, %v1289
    %v1306 = vadd.s32 %v1301, %v1303
    %vm1307 = vc.u32 %v1301, %v1303
    %v1308 = vadd.s32 %v1304, 1
    %v1309 = vsel %vm1307, %v1308, %v1304
    %v1310 = vadd.s32 %v1305, %v1309
    %v1311 = vadd.s32 %v1310, 536870912
    %v1312 = vshrl.u32 %v1311, 30
    %v1313 = vshll.u32 %v1312, 30
    %v1314 = vsub.s32 %v1310, %v1313
    %vm1315 = vcmp.lt.s32.totalorder %v1314, 0
    %v1316 = vsub.s32 0, %v1314
    %v1317 = vsel %vm1315, %v1316, %v1314
    %v1318 = vclz %v1317
    %v1319 = vsub.s32 %v1318, 2
    %vm1320 = vcmp.gt.s32.totalorder 0, %v1319
    %v1321 = vsel %vm1320, 0, %v1319
    %v1322 = vsub.s32 32, %v1321
    %v1323 = vshll.u32 %v1314, %v1321
    %v1324 = vshrl.u32 %v1306, %v1322
    %v1325 = vor.u32 %v1323, %v1324
    %v1326 = vsub.s32 4294967266, %v1321
    %v1327 = vadd.s32 %v1326, 127
    %v1328 = vshll.u32 %v1327, 23
    %v1329 = vor.u32 4788187, %v1328
    %v1330 = vand.u32 2147483647, %v1329
    %v1332 = vcvt.s32.f32 %v1325
    %v1333 = vmul.f32 %v1332, %v1330
    %v1334 = vxor.u32 %v1333, 2147483648
    %v1335 = vsel %vm1252, %v1334, %v1333
    %v1336 = vsub.s32 4, %v1312
    %v1337 = vsel %vm1252, %v1336, %v1312
    %v1338 = vsel %vm1251, %v620, %v1335
    %v1339 = vsel %vm1251, 0, %v1337
    %v1340 = vcosq.f32.pop %v1338
    %v1341 = vsinq.f32.pop %v1338
    %vm1342 = vweird.f32 %v620
    %v1343 = vadd.s32 %v1339, 3
    %v1344 = vand.u32 %v1343, 3
    %vm1345 = vcmp.lt.s32.totalorder %v1344, 2
    %vm1346 = vcmp.eq.s32.totalorder %v1344, 0
    %v1347 = vxor.u32 %v1341, 2147483648
    %v1348 = vsel %vm1346, %v1340, %v1347
    %vm1349 = vcmp.eq.s32.totalorder %v1344, 2
    %v1350 = vxor.u32 %v1340, 2147483648
    %v1351 = vsel %vm1349, %v1350, %v1341
    %v1352 = vsel %vm1345, %v1348, %v1351
    %v1353 = vsel %vm1342, nan, %v1352
    %v1354 = vand.u32 2147483647, %v621
    %vm1355 = vcmp.le.f32.partialorder %v1354, 0.7853982
    %vm1356 = vcmp.lt.s32.totalorder %v621, 0
    %v1357 = vand.u32 %v621, 2139095040
    %v1358 = vshrl.u32 %v1357, 23
    %v1359 = vsub.s32 %v1358, 127
    %v1360 = vand.u32 2147483647, %v621
    %v1361 = vand.u32 %v1360, 8388607
    %v1362 = vor.u32 %v1361, 8388608
    %v1363 = vsub.s32 0, %v1362
    %v1364 = vadd.s32 %v1359, 1
    %vm1365 = vcmp.gt.s32.totalorder %v1364, 0
    %v1366 = vsel %vm1365, %v1364, 0
    %v1367 = vshrl.u32 %v1366, 5
    %v1368 = vand.u32 %v1366, 31
    %v1369 = vsub.s32 32, %v1368
    %v1370 = vshrl.u32 683565275, %v1369
    %v1371 = vshll.u32 683565275, %v1368
    %v1372 = vshrl.u32 2475754826, %v1369
    %v1373 = vor.u32 %v1371, %v1372
    %v1374 = vshll.u32 2475754826, %v1368
    %v1375 = vshrl.u32 2131351028, %v1369
    %v1376 = vor.u32 %v1374, %v1375
    %v1377 = vshll.u32 2131351028, %v1368
    %v1378 = vshrl.u32 2102212464, %v1369
    %v1379 = vor.u32 %v1377, %v1378
    %v1380 = vshll.u32 2102212464, %v1368
    %v1381 = vshrl.u32 920167782, %v1369
    %v1382 = vor.u32 %v1380, %v1381
    %v1383 = vshll.u32 920167782, %v1368
    %v1384 = vshrl.u32 1326507024, %v1369
    %v1385 = vor.u32 %v1383, %v1384
    %vm1386 = vcmp.lt.s32.totalorder %v1367, 1
    %vm1387 = vcmp.lt.s32.totalorder %v1367, 2
    %vm1388 = vcmp.lt.s32.totalorder %v1367, 3
    %vm1389 = vcmp.lt.s32.totalorder %v1367, 4
    %v1390 = vsel %vm1386, %v1370, %v1373
    %v1391 = vsel %vm1389, %v1379, 2102212464
    %v1392 = vsel %vm1388, %v1376, %v1391
    %v1393 = vsel %vm1387, %v1390, %v1392
    %v1394 = vsel %vm1386, %v1373, %v1376
    %v1395 = vsel %vm1389, %v1382, 920167782
    %v1396 = vsel %vm1388, %v1379, %v1395
    %v1397 = vsel %vm1387, %v1394, %v1396
    %v1398 = vsel %vm1386, %v1376, %v1379
    %v1399 = vsel %vm1389, %v1385, 1326507024
    %v1400 = vsel %vm1388, %v1382, %v1399
    %v1401 = vsel %vm1387, %v1398, %v1400
    %v1402 = vshll.u32 %v1362, 8
    %v1403 = vmul.u32.u64.compose %v1402, %v1401
    %v1404 = vextract.low.u32 %v1403
    %v1405 = vextract.high.u32 %v1403
    %v1406 = vmul.u32.u64.compose %v1402, %v1397
    %v1407 = vextract.low.u32 %v1406
    %v1408 = vextract.high.u32 %v1406
    %v1409 = vmul.u32 %v1402, %v1393
    %v1410 = vadd.s32 %v1405, %v1407
    %vm1411 = vc.u32 %v1405, %v1407
    %v1412 = vadd.s32 %v1408, 1
    %v1413 = vsel %vm1411, %v1412, %v1408
    %v1414 = vadd.s32 %v1409, %v1413
    %v1415 = vadd.s32 %v1414, 536870912
    %v1416 = vshrl.u32 %v1415, 30
    %v1417 = vshll.u32 %v1416, 30
    %v1418 = vsub.s32 %v1414, %v1417
    %vm1419 = vcmp.lt.s32.totalorder %v1418, 0
    %v1420 = vsub.s32 0, %v1418
    %v1421 = vsel %vm1419, %v1420, %v1418
    %v1422 = vclz %v1421
    %v1423 = vsub.s32 %v1422, 2
    %vm1424 = vcmp.gt.s32.totalorder 0, %v1423
    %v1425 = vsel %vm1424, 0, %v1423
    %v1426 = vsub.s32 32, %v1425
    %v1427 = vshll.u32 %v1418, %v1425
    %v1428 = vshrl.u32 %v1410, %v1426
    %v1429 = vor.u32 %v1427, %v1428
    %v1430 = vsub.s32 4294967266, %v1425
    %v1431 = vadd.s32 %v1430, 127
    %v1432 = vshll.u32 %v1431, 23
    %v1433 = vor.u32 4788187, %v1432
    %v1434 = vand.u32 2147483647, %v1433
    %v1436 = vcvt.s32.f32 %v1429
    %v1437 = vmul.f32 %v1436, %v1434
    %v1438 = vxor.u32 %v1437, 2147483648
    %v1439 = vsel %vm1356, %v1438, %v1437
    %v1440 = vsub.s32 4, %v1416
    %v1441 = vsel %vm1356, %v1440, %v1416
    %v1442 = vsel %vm1355, %v621, %v1439
    %v1443 = vsel %vm1355, 0, %v1441
    %v1444 = vcosq.f32.pop %v1442
    %v1445 = vsinq.f32.pop %v1442
    %vm1446 = vweird.f32 %v621
    %v1447 = vadd.s32 %v1443, 3
    %v1448 = vand.u32 %v1447, 3
    %vm1449 = vcmp.lt.s32.totalorder %v1448, 2
    %vm1450 = vcmp.eq.s32.totalorder %v1448, 0
    %v1451 = vxor.u32 %v1445, 2147483648
    %v1452 = vsel %vm1450, %v1444, %v1451
    %vm1453 = vcmp.eq.s32.totalorder %v1448, 2
    %v1454 = vxor.u32 %v1444, 2147483648
    %v1455 = vsel %vm1453, %v1454, %v1445
    %v1456 = vsel %vm1449, %v1452, %v1455
    %v1457 = vsel %vm1446, nan, %v1456
    %v1458 = vand.u32 2147483647, %v622
    %vm1459 = vcmp.le.f32.partialorder %v1458, 0.7853982
    %vm1460 = vcmp.lt.s32.totalorder %v622, 0
    %v1461 = vand.u32 %v622, 2139095040
    %v1462 = vshrl.u32 %v1461, 23
    %v1463 = vsub.s32 %v1462, 127
    %v1464 = vand.u32 2147483647, %v622
    %v1465 = vand.u32 %v1464, 8388607
    %v1466 = vor.u32 %v1465, 8388608
    %v1467 = vsub.s32 0, %v1466
    %v1468 = vadd.s32 %v1463, 1
    %vm1469 = vcmp.gt.s32.totalorder %v1468, 0
    %v1470 = vsel %vm1469, %v1468, 0
    %v1471 = vshrl.u32 %v1470, 5
    %v1472 = vand.u32 %v1470, 31
    %v1473 = vsub.s32 32, %v1472
    %v1474 = vshrl.u32 683565275, %v1473
    %v1475 = vshll.u32 683565275, %v1472
    %v1476 = vshrl.u32 2475754826, %v1473
    %v1477 = vor.u32 %v1475, %v1476
    %v1478 = vshll.u32 2475754826, %v1472
    %v1479 = vshrl.u32 2131351028, %v1473
    %v1480 = vor.u32 %v1478, %v1479
    %v1481 = vshll.u32 2131351028, %v1472
    %v1482 = vshrl.u32 2102212464, %v1473
    %v1483 = vor.u32 %v1481, %v1482
    %v1484 = vshll.u32 2102212464, %v1472
    %v1485 = vshrl.u32 920167782, %v1473
    %v1486 = vor.u32 %v1484, %v1485
    %v1487 = vshll.u32 920167782, %v1472
    %v1488 = vshrl.u32 1326507024, %v1473
    %v1489 = vor.u32 %v1487, %v1488
    %vm1490 = vcmp.lt.s32.totalorder %v1471, 1
    %vm1491 = vcmp.lt.s32.totalorder %v1471, 2
    %vm1492 = vcmp.lt.s32.totalorder %v1471, 3
    %vm1493 = vcmp.lt.s32.totalorder %v1471, 4
    %v1494 = vsel %vm1490, %v1474, %v1477
    %v1495 = vsel %vm1493, %v1483, 2102212464
    %v1496 = vsel %vm1492, %v1480, %v1495
    %v1497 = vsel %vm1491, %v1494, %v1496
    %v1498 = vsel %vm1490, %v1477, %v1480
    %v1499 = vsel %vm1493, %v1486, 920167782
    %v1500 = vsel %vm1492, %v1483, %v1499
    %v1501 = vsel %vm1491, %v1498, %v1500
    %v1502 = vsel %vm1490, %v1480, %v1483
    %v1503 = vsel %vm1493, %v1489, 1326507024
    %v1504 = vsel %vm1492, %v1486, %v1503
    %v1505 = vsel %vm1491, %v1502, %v1504
    %v1506 = vshll.u32 %v1466, 8
    %v1507 = vmul.u32.u64.compose %v1506, %v1505
    %v1508 = vextract.low.u32 %v1507
    %v1509 = vextract.high.u32 %v1507
    %v1510 = vmul.u32.u64.compose %v1506, %v1501
    %v1511 = vextract.low.u32 %v1510
    %v1512 = vextract.high.u32 %v1510
    %v1513 = vmul.u32 %v1506, %v1497
    %v1514 = vadd.s32 %v1509, %v1511
    %vm1515 = vc.u32 %v1509, %v1511
    %v1516 = vadd.s32 %v1512, 1
    %v1517 = vsel %vm1515, %v1516, %v1512
    %v1518 = vadd.s32 %v1513, %v1517
    %v1519 = vadd.s32 %v1518, 536870912
    %v1520 = vshrl.u32 %v1519, 30
    %v1521 = vshll.u32 %v1520, 30
    %v1522 = vsub.s32 %v1518, %v1521
    %vm1523 = vcmp.lt.s32.totalorder %v1522, 0
    %v1524 = vsub.s32 0, %v1522
    %v1525 = vsel %vm1523, %v1524, %v1522
    %v1526 = vclz %v1525
    %v1527 = vsub.s32 %v1526, 2
    %vm1528 = vcmp.gt.s32.totalorder 0, %v1527
    %v1529 = vsel %vm1528, 0, %v1527
    %v1530 = vsub.s32 32, %v1529
    %v1531 = vshll.u32 %v1522, %v1529
    %v1532 = vshrl.u32 %v1514, %v1530
    %v1533 = vor.u32 %v1531, %v1532
    %v1534 = vsub.s32 4294967266, %v1529
    %v1535 = vadd.s32 %v1534, 127
    %v1536 = vshll.u32 %v1535, 23
    %v1537 = vor.u32 4788187, %v1536
    %v1538 = vand.u32 2147483647, %v1537
    %v1540 = vcvt.s32.f32 %v1533
    %v1541 = vmul.f32 %v1540, %v1538
    %v1542 = vxor.u32 %v1541, 2147483648
    %v1543 = vsel %vm1460, %v1542, %v1541
    %v1544 = vsub.s32 4, %v1520
    %v1545 = vsel %vm1460, %v1544, %v1520
    %v1546 = vsel %vm1459, %v622, %v1543
    %v1547 = vsel %vm1459, 0, %v1545
    %v1548 = vcosq.f32.pop %v1546
    %v1549 = vsinq.f32.pop %v1546
    %vm1550 = vweird.f32 %v622
    %v1551 = vadd.s32 %v1547, 3
    %v1552 = vand.u32 %v1551, 3
    %vm1553 = vcmp.lt.s32.totalorder %v1552, 2
    %vm1554 = vcmp.eq.s32.totalorder %v1552, 0
    %v1555 = vxor.u32 %v1549, 2147483648
    %v1556 = vsel %vm1554, %v1548, %v1555
    %vm1557 = vcmp.eq.s32.totalorder %v1552, 2
    %v1558 = vxor.u32 %v1548, 2147483648
    %v1559 = vsel %vm1557, %v1558, %v1549
    %v1560 = vsel %vm1553, %v1556, %v1559
    %v1561 = vsel %vm1550, nan, %v1560
    %v1562 = vand.u32 2147483647, %v623
    %vm1563 = vcmp.le.f32.partialorder %v1562, 0.7853982
    %vm1564 = vcmp.lt.s32.totalorder %v623, 0
    %v1565 = vand.u32 %v623, 2139095040
    %v1566 = vshrl.u32 %v1565, 23
    %v1567 = vsub.s32 %v1566, 127
    %v1568 = vand.u32 2147483647, %v623
    %v1569 = vand.u32 %v1568, 8388607
    %v1570 = vor.u32 %v1569, 8388608
    %v1571 = vsub.s32 0, %v1570
    %v1572 = vadd.s32 %v1567, 1
    %vm1573 = vcmp.gt.s32.totalorder %v1572, 0
    %v1574 = vsel %vm1573, %v1572, 0
    %v1575 = vshrl.u32 %v1574, 5
    %v1576 = vand.u32 %v1574, 31
    %v1577 = vsub.s32 32, %v1576
    %v1578 = vshrl.u32 683565275, %v1577
    %v1579 = vshll.u32 683565275, %v1576
    %v1580 = vshrl.u32 2475754826, %v1577
    %v1581 = vor.u32 %v1579, %v1580
    %v1582 = vshll.u32 2475754826, %v1576
    %v1583 = vshrl.u32 2131351028, %v1577
    %v1584 = vor.u32 %v1582, %v1583
    %v1585 = vshll.u32 2131351028, %v1576
    %v1586 = vshrl.u32 2102212464, %v1577
    %v1587 = vor.u32 %v1585, %v1586
    %v1588 = vshll.u32 2102212464, %v1576
    %v1589 = vshrl.u32 920167782, %v1577
    %v1590 = vor.u32 %v1588, %v1589
    %v1591 = vshll.u32 920167782, %v1576
    %v1592 = vshrl.u32 1326507024, %v1577
    %v1593 = vor.u32 %v1591, %v1592
    %vm1594 = vcmp.lt.s32.totalorder %v1575, 1
    %vm1595 = vcmp.lt.s32.totalorder %v1575, 2
    %vm1596 = vcmp.lt.s32.totalorder %v1575, 3
    %vm1597 = vcmp.lt.s32.totalorder %v1575, 4
    %v1598 = vsel %vm1594, %v1578, %v1581
    %v1599 = vsel %vm1597, %v1587, 2102212464
    %v1600 = vsel %vm1596, %v1584, %v1599
    %v1601 = vsel %vm1595, %v1598, %v1600
    %v1602 = vsel %vm1594, %v1581, %v1584
    %v1603 = vsel %vm1597, %v1590, 920167782
    %v1604 = vsel %vm1596, %v1587, %v1603
    %v1605 = vsel %vm1595, %v1602, %v1604
    %v1606 = vsel %vm1594, %v1584, %v1587
    %v1607 = vsel %vm1597, %v1593, 1326507024
    %v1608 = vsel %vm1596, %v1590, %v1607
    %v1609 = vsel %vm1595, %v1606, %v1608
    %v1610 = vshll.u32 %v1570, 8
    %v1611 = vmul.u32.u64.compose %v1610, %v1609
    %v1612 = vextract.low.u32 %v1611
    %v1613 = vextract.high.u32 %v1611
    %v1614 = vmul.u32.u64.compose %v1610, %v1605
    %v1615 = vextract.low.u32 %v1614
    %v1616 = vextract.high.u32 %v1614
    %v1617 = vmul.u32 %v1610, %v1601
    %v1618 = vadd.s32 %v1613, %v1615
    %vm1619 = vc.u32 %v1613, %v1615
    %v1620 = vadd.s32 %v1616, 1
    %v1621 = vsel %vm1619, %v1620, %v1616
    %v1622 = vadd.s32 %v1617, %v1621
    %v1623 = vadd.s32 %v1622, 536870912
    %v1624 = vshrl.u32 %v1623, 30
    %v1625 = vshll.u32 %v1624, 30
    %v1626 = vsub.s32 %v1622, %v1625
    %vm1627 = vcmp.lt.s32.totalorder %v1626, 0
    %v1628 = vsub.s32 0, %v1626
    %v1629 = vsel %vm1627, %v1628, %v1626
    %v1630 = vclz %v1629
    %v1631 = vsub.s32 %v1630, 2
    %vm1632 = vcmp.gt.s32.totalorder 0, %v1631
    %v1633 = vsel %vm1632, 0, %v1631
    %v1634 = vsub.s32 32, %v1633
    %v1635 = vshll.u32 %v1626, %v1633
    %v1636 = vshrl.u32 %v1618, %v1634
    %v1637 = vor.u32 %v1635, %v1636
    %v1638 = vsub.s32 4294967266, %v1633
    %v1639 = vadd.s32 %v1638, 127
    %v1640 = vshll.u32 %v1639, 23
    %v1641 = vor.u32 4788187, %v1640
    %v1642 = vand.u32 2147483647, %v1641
    %v1644 = vcvt.s32.f32 %v1637
    %v1645 = vmul.f32 %v1644, %v1642
    %v1646 = vxor.u32 %v1645, 2147483648
    %v1647 = vsel %vm1564, %v1646, %v1645
    %v1648 = vsub.s32 4, %v1624
    %v1649 = vsel %vm1564, %v1648, %v1624
    %v1650 = vsel %vm1563, %v623, %v1647
    %v1651 = vsel %vm1563, 0, %v1649
    %v1652 = vcosq.f32.pop %v1650
    %v1653 = vsinq.f32.pop %v1650
    %vm1654 = vweird.f32 %v623
    %v1655 = vadd.s32 %v1651, 3
    %v1656 = vand.u32 %v1655, 3
    %vm1657 = vcmp.lt.s32.totalorder %v1656, 2
    %vm1658 = vcmp.eq.s32.totalorder %v1656, 0
    %v1659 = vxor.u32 %v1653, 2147483648
    %v1660 = vsel %vm1658, %v1652, %v1659
    %vm1661 = vcmp.eq.s32.totalorder %v1656, 2
    %v1662 = vxor.u32 %v1652, 2147483648
    %v1663 = vsel %vm1661, %v1662, %v1653
    %v1664 = vsel %vm1657, %v1660, %v1663
    %v1665 = vsel %vm1654, nan, %v1664
    %v1666 = vand.u32 2147483647, %v624
    %vm1667 = vcmp.le.f32.partialorder %v1666, 0.7853982
    %vm1668 = vcmp.lt.s32.totalorder %v624, 0
    %v1669 = vand.u32 %v624, 2139095040
    %v1670 = vshrl.u32 %v1669, 23
    %v1671 = vsub.s32 %v1670, 127
    %v1672 = vand.u32 2147483647, %v624
    %v1673 = vand.u32 %v1672, 8388607
    %v1674 = vor.u32 %v1673, 8388608
    %v1675 = vsub.s32 0, %v1674
    %v1676 = vadd.s32 %v1671, 1
    %vm1677 = vcmp.gt.s32.totalorder %v1676, 0
    %v1678 = vsel %vm1677, %v1676, 0
    %v1679 = vshrl.u32 %v1678, 5
    %v1680 = vand.u32 %v1678, 31
    %v1681 = vsub.s32 32, %v1680
    %v1682 = vshrl.u32 683565275, %v1681
    %v1683 = vshll.u32 683565275, %v1680
    %v1684 = vshrl.u32 2475754826, %v1681
    %v1685 = vor.u32 %v1683, %v1684
    %v1686 = vshll.u32 2475754826, %v1680
    %v1687 = vshrl.u32 2131351028, %v1681
    %v1688 = vor.u32 %v1686, %v1687
    %v1689 = vshll.u32 2131351028, %v1680
    %v1690 = vshrl.u32 2102212464, %v1681
    %v1691 = vor.u32 %v1689, %v1690
    %v1692 = vshll.u32 2102212464, %v1680
    %v1693 = vshrl.u32 920167782, %v1681
    %v1694 = vor.u32 %v1692, %v1693
    %v1695 = vshll.u32 920167782, %v1680
    %v1696 = vshrl.u32 1326507024, %v1681
    %v1697 = vor.u32 %v1695, %v1696
    %vm1698 = vcmp.lt.s32.totalorder %v1679, 1
    %vm1699 = vcmp.lt.s32.totalorder %v1679, 2
    %vm1700 = vcmp.lt.s32.totalorder %v1679, 3
    %vm1701 = vcmp.lt.s32.totalorder %v1679, 4
    %v1702 = vsel %vm1698, %v1682, %v1685
    %v1703 = vsel %vm1701, %v1691, 2102212464
    %v1704 = vsel %vm1700, %v1688, %v1703
    %v1705 = vsel %vm1699, %v1702, %v1704
    %v1706 = vsel %vm1698, %v1685, %v1688
    %v1707 = vsel %vm1701, %v1694, 920167782
    %v1708 = vsel %vm1700, %v1691, %v1707
    %v1709 = vsel %vm1699, %v1706, %v1708
    %v1710 = vsel %vm1698, %v1688, %v1691
    %v1711 = vsel %vm1701, %v1697, 1326507024
    %v1712 = vsel %vm1700, %v1694, %v1711
    %v1713 = vsel %vm1699, %v1710, %v1712
    %v1714 = vshll.u32 %v1674, 8
    %v1715 = vmul.u32.u64.compose %v1714, %v1713
    %v1716 = vextract.low.u32 %v1715
    %v1717 = vextract.high.u32 %v1715
    %v1718 = vmul.u32.u64.compose %v1714, %v1709
    %v1719 = vextract.low.u32 %v1718
    %v1720 = vextract.high.u32 %v1718
    %v1721 = vmul.u32 %v1714, %v1705
    %v1722 = vadd.s32 %v1717, %v1719
    %vm1723 = vc.u32 %v1717, %v1719
    %v1724 = vadd.s32 %v1720, 1
    %v1725 = vsel %vm1723, %v1724, %v1720
    %v1726 = vadd.s32 %v1721, %v1725
    %v1727 = vadd.s32 %v1726, 536870912
    %v1728 = vshrl.u32 %v1727, 30
    %v1729 = vshll.u32 %v1728, 30
    %v1730 = vsub.s32 %v1726, %v1729
    %vm1731 = vcmp.lt.s32.totalorder %v1730, 0
    %v1732 = vsub.s32 0, %v1730
    %v1733 = vsel %vm1731, %v1732, %v1730
    %v1734 = vclz %v1733
    %v1735 = vsub.s32 %v1734, 2
    %vm1736 = vcmp.gt.s32.totalorder 0, %v1735
    %v1737 = vsel %vm1736, 0, %v1735
    %v1738 = vsub.s32 32, %v1737
    %v1739 = vshll.u32 %v1730, %v1737
    %v1740 = vshrl.u32 %v1722, %v1738
    %v1741 = vor.u32 %v1739, %v1740
    %v1742 = vsub.s32 4294967266, %v1737
    %v1743 = vadd.s32 %v1742, 127
    %v1744 = vshll.u32 %v1743, 23
    %v1745 = vor.u32 4788187, %v1744
    %v1746 = vand.u32 2147483647, %v1745
    %v1748 = vcvt.s32.f32 %v1741
    %v1749 = vmul.f32 %v1748, %v1746
    %v1750 = vxor.u32 %v1749, 2147483648
    %v1751 = vsel %vm1668, %v1750, %v1749
    %v1752 = vsub.s32 4, %v1728
    %v1753 = vsel %vm1668, %v1752, %v1728
    %v1754 = vsel %vm1667, %v624, %v1751
    %v1755 = vsel %vm1667, 0, %v1753
    %v1756 = vcosq.f32.pop %v1754
    %v1757 = vsinq.f32.pop %v1754
    %vm1758 = vweird.f32 %v624
    %v1759 = vadd.s32 %v1755, 3
    %v1760 = vand.u32 %v1759, 3
    %vm1761 = vcmp.lt.s32.totalorder %v1760, 2
    %vm1762 = vcmp.eq.s32.totalorder %v1760, 0
    %v1763 = vxor.u32 %v1757, 2147483648
    %v1764 = vsel %vm1762, %v1756, %v1763
    %vm1765 = vcmp.eq.s32.totalorder %v1760, 2
    %v1766 = vxor.u32 %v1756, 2147483648
    %v1767 = vsel %vm1765, %v1766, %v1757
    %v1768 = vsel %vm1761, %v1764, %v1767
    %v1769 = vsel %vm1758, nan, %v1768
    %v1770 = vand.u32 2147483647, %v625
    %vm1771 = vcmp.le.f32.partialorder %v1770, 0.7853982
    %vm1772 = vcmp.lt.s32.totalorder %v625, 0
    %v1773 = vand.u32 %v625, 2139095040
    %v1774 = vshrl.u32 %v1773, 23
    %v1775 = vsub.s32 %v1774, 127
    %v1776 = vand.u32 2147483647, %v625
    %v1777 = vand.u32 %v1776, 8388607
    %v1778 = vor.u32 %v1777, 8388608
    %v1779 = vsub.s32 0, %v1778
    %v1780 = vadd.s32 %v1775, 1
    %vm1781 = vcmp.gt.s32.totalorder %v1780, 0
    %v1782 = vsel %vm1781, %v1780, 0
    %v1783 = vshrl.u32 %v1782, 5
    %v1784 = vand.u32 %v1782, 31
    %v1785 = vsub.s32 32, %v1784
    %v1786 = vshrl.u32 683565275, %v1785
    %v1787 = vshll.u32 683565275, %v1784
    %v1788 = vshrl.u32 2475754826, %v1785
    %v1789 = vor.u32 %v1787, %v1788
    %v1790 = vshll.u32 2475754826, %v1784
    %v1791 = vshrl.u32 2131351028, %v1785
    %v1792 = vor.u32 %v1790, %v1791
    %v1793 = vshll.u32 2131351028, %v1784
    %v1794 = vshrl.u32 2102212464, %v1785
    %v1795 = vor.u32 %v1793, %v1794
    %v1796 = vshll.u32 2102212464, %v1784
    %v1797 = vshrl.u32 920167782, %v1785
    %v1798 = vor.u32 %v1796, %v1797
    %v1799 = vshll.u32 920167782, %v1784
    %v1800 = vshrl.u32 1326507024, %v1785
    %v1801 = vor.u32 %v1799, %v1800
    %vm1802 = vcmp.lt.s32.totalorder %v1783, 1
    %vm1803 = vcmp.lt.s32.totalorder %v1783, 2
    %vm1804 = vcmp.lt.s32.totalorder %v1783, 3
    %vm1805 = vcmp.lt.s32.totalorder %v1783, 4
    %v1806 = vsel %vm1802, %v1786, %v1789
    %v1807 = vsel %vm1805, %v1795, 2102212464
    %v1808 = vsel %vm1804, %v1792, %v1807
    %v1809 = vsel %vm1803, %v1806, %v1808
    %v1810 = vsel %vm1802, %v1789, %v1792
    %v1811 = vsel %vm1805, %v1798, 920167782
    %v1812 = vsel %vm1804, %v1795, %v1811
    %v1813 = vsel %vm1803, %v1810, %v1812
    %v1814 = vsel %vm1802, %v1792, %v1795
    %v1815 = vsel %vm1805, %v1801, 1326507024
    %v1816 = vsel %vm1804, %v1798, %v1815
    %v1817 = vsel %vm1803, %v1814, %v1816
    %v1818 = vshll.u32 %v1778, 8
    %v1819 = vmul.u32.u64.compose %v1818, %v1817
    %v1820 = vextract.low.u32 %v1819
    %v1821 = vextract.high.u32 %v1819
    %v1822 = vmul.u32.u64.compose %v1818, %v1813
    %v1823 = vextract.low.u32 %v1822
    %v1824 = vextract.high.u32 %v1822
    %v1825 = vmul.u32 %v1818, %v1809
    %v1826 = vadd.s32 %v1821, %v1823
    %vm1827 = vc.u32 %v1821, %v1823
    %v1828 = vadd.s32 %v1824, 1
    %v1829 = vsel %vm1827, %v1828, %v1824
    %v1830 = vadd.s32 %v1825, %v1829
    %v1831 = vadd.s32 %v1830, 536870912
    %v1832 = vshrl.u32 %v1831, 30
    %v1833 = vshll.u32 %v1832, 30
    %v1834 = vsub.s32 %v1830, %v1833
    %vm1835 = vcmp.lt.s32.totalorder %v1834, 0
    %v1836 = vsub.s32 0, %v1834
    %v1837 = vsel %vm1835, %v1836, %v1834
    %v1838 = vclz %v1837
    %v1839 = vsub.s32 %v1838, 2
    %vm1840 = vcmp.gt.s32.totalorder 0, %v1839
    %v1841 = vsel %vm1840, 0, %v1839
    %v1842 = vsub.s32 32, %v1841
    %v1843 = vshll.u32 %v1834, %v1841
    %v1844 = vshrl.u32 %v1826, %v1842
    %v1845 = vor.u32 %v1843, %v1844
    %v1846 = vsub.s32 4294967266, %v1841
    %v1847 = vadd.s32 %v1846, 127
    %v1848 = vshll.u32 %v1847, 23
    %v1849 = vor.u32 4788187, %v1848
    %v1850 = vand.u32 2147483647, %v1849
    %v1852 = vcvt.s32.f32 %v1845
    %v1853 = vmul.f32 %v1852, %v1850
    %v1854 = vxor.u32 %v1853, 2147483648
    %v1855 = vsel %vm1772, %v1854, %v1853
    %v1856 = vsub.s32 4, %v1832
    %v1857 = vsel %vm1772, %v1856, %v1832
    %v1858 = vsel %vm1771, %v625, %v1855
    %v1859 = vsel %vm1771, 0, %v1857
    %v1860 = vcosq.f32.pop %v1858
    %v1861 = vsinq.f32.pop %v1858
    %vm1862 = vweird.f32 %v625
    %v1863 = vadd.s32 %v1859, 3
    %v1864 = vand.u32 %v1863, 3
    %vm1865 = vcmp.lt.s32.totalorder %v1864, 2
    %vm1866 = vcmp.eq.s32.totalorder %v1864, 0
    %v1867 = vxor.u32 %v1861, 2147483648
    %v1868 = vsel %vm1866, %v1860, %v1867
    %vm1869 = vcmp.eq.s32.totalorder %v1864, 2
    %v1870 = vxor.u32 %v1860, 2147483648
    %v1871 = vsel %vm1869, %v1870, %v1861
    %v1872 = vsel %vm1865, %v1868, %v1871
    %v1873 = vsel %vm1862, nan, %v1872
    %1874 = vst [vmem:[#allocation10] sm:$0xff] %v729
    %1875 = vst [vmem:[#allocation10 + $0x8] sm:$0xff] %v833
    %1876 = vst [vmem:[#allocation10 + $0x10] sm:$0xff] %v937
    %1877 = vst [vmem:[#allocation10 + $0x18] sm:$0xff] %v1041
    %1878 = vst [vmem:[#allocation10 + $0x20] sm:$0xff] %v1145
    %1879 = vst [vmem:[#allocation10 + $0x28] sm:$0xff] %v1249
    %1880 = vst [vmem:[#allocation10 + $0x30] sm:$0xff] %v1353
    %1881 = vst [vmem:[#allocation10 + $0x38] sm:$0xff] %v1457
    %1882 = vst [vmem:[#allocation10 + $0x40] sm:$0xff] %v1561
    %1883 = vst [vmem:[#allocation10 + $0x48] sm:$0xff] %v1665
    %1884 = vst [vmem:[#allocation10 + $0x50] sm:$0xff] %v1769
    %1885 = vst [vmem:[#allocation10 + $0x58] sm:$0xff] %v1873
    // Predicated region
    $region34: #{tpu_custom_call.1} parent=1 // pred_check
      _
    $region35: #{tpu_custom_call.1} parent=1 // pred_check_branch
      %1887 = sbr.rel (0) target = $region37
    $region36: #{tpu_custom_call.1} parent=1 // pred_region
      %s1889 = ssub.s32 1536, 1536
      %1890 = vsyncadd [#allocation4], %s1889
      %s1891 = sshll.u32 [#allocation10], 4
      %s1892 = int_to_ptr.vmem [resolvable:$true] %s1891
      %1897 = dma.vmem_to_hbm [thread:$0]  %s1892, 1536, %s4, [#allocation4], 768, 768, 48
    $region37: #{tpu_custom_call.1} parent=1 // pred_fallthru
      _
    // Predicated region
    $region38: #{tpu_custom_call.1} parent=1 // pred_check
      _
    $region39: #{tpu_custom_call.1} parent=1 // pred_check_branch
      %1899 = sbr.rel (0) target = $region41
    $region40: #{tpu_custom_call.1} parent=1 // pred_region
      %1900 = dma.done [#allocation4], 1536
    $region41: #{tpu_custom_call.1} parent=1 // pred_fallthru
      _
    %1901 = vsyncpa [#allocation3], 1
    %1902 = vsyncpa [#allocation6], 1
    %1903 = vsyncpa [#allocation9], 1
    %1904 = vsyncpa [#allocation4], 1

</llo_original>
